<compile_context>
chip_gen: v5e
topology: v5e:2x2
jax: 0.10.0
libtpu: 0.0.40
codegen_flags: <defaults>
</compile_context>

<pallas_src>
import functools

import jax
import jax.numpy as jnp
import numpy as np
from jax.experimental import pallas as pl
from jax.experimental.pallas import tpu as pltpu


def gru_kernel(gi_ref,    # bf16 [TT, TB, 3D]  input-gate preactivations (biases folded)
               whh_ref,   # bf16 [D, 3D]       fused recurrent weight (W_hr|W_hz|W_hn)^T
               bhn_ref,   # f32  [1, D]        recurrent candidate bias b_hn
               out_ref,   # f32  [TT, TB, D]   time-major output block
               h_ref,     # f32  [TB, D]       hidden-state carry (VMEM scratch)
               *, unroll):
    # Reset the carry at the start of each batch tile (time axis is the inner grid axis
    # and must stay "arbitrary" -- the recurrence is serial).
    @pl.when(pl.program_id(1) == 0)
    def _():
        h_ref[...] = jnp.zeros_like(h_ref)

    TB, D = h_ref.shape
    TT = gi_ref.shape[0]

    whh = whh_ref[...]                                    # resident across all TT steps
    bhn = jnp.broadcast_to(bhn_ref[...], (TB, D))         # broadcast hoisted out of loop

    def step(i, h):
        # One fused [TB,D] x [D,3D] matmul on the serial critical path
        # (bf16 operands, f32 accumulation).
        gh = jnp.dot(h.astype(jnp.bfloat16), whh,
                     preferred_element_type=jnp.float32)  # [TB, 3D]
        gi = gi_ref[i].astype(jnp.float32)                # [TB, 3D]  (b_ir+b_hr etc. folded)

        # r and z share one sigmoid issue over the fused [TB, 2D] slab.
        rz = jax.nn.sigmoid(gi[:, :2 * D] + gh[:, :2 * D])
        r = rz[:, :D]
        z = rz[:, D:]
        n = jnp.tanh(gi[:, 2 * D:] + r * (gh[:, 2 * D:] + bhn))
        h = n + z * (h - n)                               # == (1-z)*n + z*h, one fewer mul

        out_ref[i] = h.astype(out_ref.dtype)              # dense [TB, D] store per step
        return h

    h_ref[...] = jax.lax.fori_loop(0, TT, step, h_ref[...], unroll=unroll)


def gru_pallas(gi, whh_t, bhn, *, block_t=32, vmem_target_bytes=24 * 1024 * 1024):
    """gi: [T, B, 3D] bf16 (input projections, r/z biases folded).
    whh_t: [D, 3D] bf16 fused recurrent weight.  bhn: [1, D] f32.
    Returns the time-major GRU output [Tp, B, D] f32 (Tp >= T, padded steps at the end)."""
    T, B, threeD = gi.shape
    D = threeD // 3

    # Split the batch axis only when each tile still fills the MXU M dimension
    # (only v7x's 2 TensorCores can exploit it; on 1-TC chips it is a pure serial loop).
    n_b = 2 if (B % 2 == 0 and (B // 2) % 8 == 0 and (B // 2) >= 128) else 1
    TB = B // n_b

    # Explicit VMEM budget: double-buffered gi (bf16) + out (f32) blocks per timestep,
    # plus the (tiny) weights/bias double-buffers and the h carry.  Keeps the pipeline
    # alive on v7x's 64 MiB VMEM while letting TT grow on 128 MiB parts.
    per_step = 2 * (TB * 3 * D * 2 + TB * D * 4)          # dbl-buffered gi + out, per step
    fixed = 2 * (D * 3 * D * 2 + D * 4) + TB * D * 4      # weights + bias (x2) + h carry
    tt_cap = max(1, (vmem_target_bytes - fixed) // per_step)
    TT = int(max(1, min(block_t, T, tt_cap)))
    n_t = -(-T // TT)
    Tp = n_t * TT
    if Tp != T:
        # Padded steps see zero preactivations; their outputs are sliced off by the caller
        # (the final hidden state is not returned, so the corrupted tail carry is unused).
        gi = jnp.pad(gi, ((0, Tp - T), (0, 0), (0, 0)))

    vmem_limit = int(min(112 * 1024 * 1024,
                         max(16 * 1024 * 1024, 2 * (per_step * TT + fixed))))

    # Full unroll for short blocks (LLO visibility); bounded unroll for long blocks so
    # vreg pressure stays at ~one iteration's worth at production TB/D.
    unroll = True if TT <= 32 else 8
    kernel = functools.partial(gru_kernel, unroll=unroll)

    return pl.pallas_call(
        kernel,
        out_shape=jax.ShapeDtypeStruct((Tp, B, D), jnp.float32),
        grid_spec=pltpu.PrefetchScalarGridSpec(
            num_scalar_prefetch=0,
            grid=(n_b, n_t),
            in_specs=[
                pl.BlockSpec((TT, TB, 3 * D), lambda b, t: (t, b, 0)),
                pl.BlockSpec((D, 3 * D), lambda b, t: (0, 0)),
                pl.BlockSpec((1, D), lambda b, t: (0, 0)),
            ],
            out_specs=pl.BlockSpec((TT, TB, D), lambda b, t: (t, b, 0)),
            scratch_shapes=[pltpu.VMEM((TB, D), jnp.float32)],
        ),
        compiler_params=pltpu.CompilerParams(
            dimension_semantics=("parallel", "arbitrary"),  # time recurrence is serial
            vmem_limit_bytes=vmem_limit),
    )(gi, whh_t, bhn)


@jax.jit
def pisa_forward(x_tokens, emb_table, w_ih, w_hh, b_ih, b_hh):
    """PISA.forward: x_tokens [B, T] int32 -> GRU output [B, T, D] f32."""
    B, T = x_tokens.shape
    D = emb_table.shape[1]

    # Embedding gather directly in time-major order (transpose the tiny int index
    # matrix, never the [B, T, D] activation tensor).
    emb_tbd = jnp.take(emb_table, x_tokens.T, axis=0)               # [T, B, D]

    # Hoisted non-recurrent input projection.  Bias fold + bf16 cast fuse into the
    # matmul epilogue, so no f32 [T, B, 3D] intermediate round-trips HBM.
    bias = jnp.concatenate([b_ih[:2 * D] + b_hh[:2 * D], b_ih[2 * D:]])   # b_hr/b_hz folded
    gi = (jnp.einsum('tbd,gd->tbg',
                     emb_tbd.astype(jnp.bfloat16),
                     w_ih.astype(jnp.bfloat16),
                     preferred_element_type=jnp.float32) + bias
          ).astype(jnp.bfloat16)                                    # [T, B, 3D]

    # Fused recurrent weight, transposed once (bf16, MXU-native, N = 3D).
    whh_t = jnp.transpose(w_hh).astype(jnp.bfloat16)                # [D, 3D]
    bhn = b_hh[2 * D:].reshape(1, D).astype(jnp.float32)            # kept separate (r gate)

    out_tbd = gru_pallas(gi, whh_t, bhn)                            # [Tp, B, D] time-major
    return jnp.transpose(out_tbd[:T], (1, 0, 2))                    # [B, T, D]


def gru_reference(emb_btd, w_ih, w_hh, b_ih, b_hh):
    """Pure-JAX f32 reference (PyTorch nn.GRU semantics) for validation."""
    B, T, D = emb_btd.shape

    def step(h, x_t):
        gi = x_t @ w_ih.T + b_ih
        gh = h @ w_hh.T + b_hh
        i_r, i_z, i_n = gi[:, :D], gi[:, D:2 * D], gi[:, 2 * D:]
        h_r, h_z, h_n = gh[:, :D], gh[:, D:2 * D], gh[:, 2 * D:]
        r = jax.nn.sigmoid(i_r + h_r)
        z = jax.nn.sigmoid(i_z + h_z)
        n = jnp.tanh(i_n + r * h_n)
        h_new = (1.0 - z) * n + z * h
        return h_new, h_new

    h0 = jnp.zeros((B, D), jnp.float32)
    _, outs = jax.lax.scan(step, h0, jnp.transpose(emb_btd, (1, 0, 2)))
    return jnp.transpose(outs, (1, 0, 2))


if __name__ == "__main__":
    # Small synthetic configuration consistent with the module:
    #   item embedding [n_items, D] (padding_idx=0), GRU(input=D, hidden=D, 1 layer).
    B, T, D = 8, 20, 32
    n_items = 50

    key = jax.random.PRNGKey(0)
    k_emb, k_wih, k_whh, k_bih, k_bhh, k_x = jax.random.split(key, 6)

    bound = 1.0 / np.sqrt(D)
    emb_table = jax.random.normal(k_emb, (n_items, D), jnp.float32)
    emb_table = emb_table.at[0].set(0.0)                     # padding_idx=0 -> zero row
    w_ih = jax.random.uniform(k_wih, (3 * D, D), jnp.float32, -bound, bound)
    w_hh = jax.random.uniform(k_whh, (3 * D, D), jnp.float32, -bound, bound)
    b_ih = jax.random.uniform(k_bih, (3 * D,), jnp.float32, -bound, bound)
    b_hh = jax.random.uniform(k_bhh, (3 * D,), jnp.float32, -bound, bound)

    # Token sequences (include some trailing padding zeros, as PISA pads with 0).
    x = jax.random.randint(k_x, (B, T), 1, n_items, jnp.int32)
    x = x.at[:, T - 3:].set(0)

    out = pisa_forward(x, emb_table, w_ih, w_hh, b_ih, b_hh)
    out = jax.block_until_ready(out)

    # Validate against the pure-JAX f32 GRU reference (kernel uses bf16 matmul
    # operands with f32 accumulation, hence the slightly loosened tolerance).
    emb = jnp.take(emb_table, x, axis=0)
    ref = gru_reference(emb, w_ih, w_hh, b_ih, b_hh)
    assert out.shape == (B, T, D)
    np.testing.assert_allclose(np.asarray(out), np.asarray(ref), rtol=2e-2, atol=2e-2)

    print("KERNEL_OK")
</pallas_src>

<mosaic_0001>
module attributes {stable_mosaic.version = 11 : i64} {
  func.func @gru_kernel(%arg0: i32, %arg1: i32, %arg2: memref<20x8x96xbf16, #tpu.memory_space<vmem>>, %arg3: memref<32x96xbf16, #tpu.memory_space<vmem>>, %arg4: memref<1x32xf32, #tpu.memory_space<vmem>>, %arg5: memref<20x8x32xf32, #tpu.memory_space<vmem>>, %arg6: memref<8x32xf32, #tpu.memory_space<vmem>>) attributes {dimension_semantics = [#tpu.dimension_semantics<parallel>, #tpu.dimension_semantics<arbitrary>], iteration_bounds = array<i64: 1, 1>, scalar_prefetch = 0 : i64, scratch_operands = 1 : i64, tpu.core_type = #tpu.core_type<tc>, window_params = [{transform_indices = @transform_0, window_bounds = array<i64: 20, 8, 96>}, {pipeline_mode = #tpu.pipeline_mode<synchronous>, transform_indices = @transform_1, window_bounds = array<i64: 32, 96>}, {pipeline_mode = #tpu.pipeline_mode<synchronous>, transform_indices = @transform_2, window_bounds = array<i64: 1, 32>}, {transform_indices = @transform_3, window_bounds = array<i64: 20, 8, 32>}]} {
    %c0_i32 = arith.constant 0 : i32
    %0 = arith.cmpi eq, %arg1, %c0_i32 : i32
    %1 = arith.extui %0 : i1 to i32
    %c0_i32_0 = arith.constant 0 : i32
    %2 = arith.cmpi ne, %1, %c0_i32_0 : i32
    scf.if %2 {
      %cst_128 = arith.constant 0.000000e+00 : f32
      %589 = vector.broadcast %cst_128 : f32 to vector<8x32xf32>
      %c0_129 = arith.constant 0 : index
      %c0_130 = arith.constant 0 : index
      %590 = vector.load %arg6[%c0_129, %c0_130] : memref<8x32xf32, #tpu.memory_space<vmem>>, vector<8x32xf32>
      tpu.vector_store %arg6[%c0_129, %c0_130], %589 {strides = array<i32>} : memref<8x32xf32, #tpu.memory_space<vmem>>, vector<8x32xf32>,
    } else {
    }
    %c0 = arith.constant 0 : index
    %c0_1 = arith.constant 0 : index
    %3 = vector.load %arg3[%c0, %c0_1] : memref<32x96xbf16, #tpu.memory_space<vmem>>, vector<32x96xbf16>
    %c0_2 = arith.constant 0 : index
    %c0_3 = arith.constant 0 : index
    %4 = vector.load %arg4[%c0_2, %c0_3] : memref<1x32xf32, #tpu.memory_space<vmem>>, vector<1x32xf32>
    %5 = vector.shape_cast %4 : vector<1x32xf32> to vector<1x32xf32>
    %6 = vector.broadcast %5 : vector<1x32xf32> to vector<8x32xf32>
    %c0_4 = arith.constant 0 : index
    %c0_5 = arith.constant 0 : index
    %7 = vector.load %arg6[%c0_4, %c0_5] : memref<8x32xf32, #tpu.memory_space<vmem>>, vector<8x32xf32>
    %c0_i32_6 = arith.constant 0 : i32
    %8 = arith.truncf %7 : vector<8x32xf32> to vector<8x32xbf16>
    %cst = arith.constant dense<0.000000e+00> : vector<8x96xf32>
    %9 = tpu.matmul %8, %3, %cst {dimension_numbers = #tpu.dot_dimension_numbers<[1], [0], [0], [1], [0, 0, 1, 1], [], []>} : vector<8x32xbf16>, vector<32x96xbf16>, vector<8x96xf32> -> vector<8x96xf32>
    %10 = arith.index_cast %c0_i32_6 : i32 to index
    %c0_7 = arith.constant 0 : index
    %c0_8 = arith.constant 0 : index
    %11 = vector.load %arg2[%10, %c0_7, %c0_8] : memref<20x8x96xbf16, #tpu.memory_space<vmem>>, vector<1x8x96xbf16>
    %12 = vector.shape_cast %11 : vector<1x8x96xbf16> to vector<8x96xbf16>
    %13 = arith.extf %12 : vector<8x96xbf16> to vector<8x96xf32>
    %14 = vector.extract_strided_slice %13 {offsets = [0, 0], sizes = [8, 64], strides = [1, 1]} : vector<8x96xf32> to vector<8x64xf32>
    %15 = vector.extract_strided_slice %9 {offsets = [0, 0], sizes = [8, 64], strides = [1, 1]} : vector<8x96xf32> to vector<8x64xf32>
    %16 = arith.addf %14, %15 : vector<8x64xf32>
    %17 = arith.negf %16 : vector<8x64xf32>
    %18 = math.exp %17 : vector<8x64xf32>
    %cst_9 = arith.constant 1.000000e+00 : f32
    %19 = vector.broadcast %cst_9 : f32 to vector<8x64xf32>
    %20 = arith.addf %19, %18 : vector<8x64xf32>
    %21 = arith.divf %19, %20 : vector<8x64xf32>
    %22 = vector.extract_strided_slice %21 {offsets = [0, 0], sizes = [8, 32], strides = [1, 1]} : vector<8x64xf32> to vector<8x32xf32>
    %23 = vector.extract_strided_slice %21 {offsets = [0, 32], sizes = [8, 32], strides = [1, 1]} : vector<8x64xf32> to vector<8x32xf32>
    %24 = vector.extract_strided_slice %13 {offsets = [0, 64], sizes = [8, 32], strides = [1, 1]} : vector<8x96xf32> to vector<8x32xf32>
    %25 = vector.extract_strided_slice %9 {offsets = [0, 64], sizes = [8, 32], strides = [1, 1]} : vector<8x96xf32> to vector<8x32xf32>
    %26 = arith.addf %25, %6 : vector<8x32xf32>
    %27 = arith.mulf %22, %26 : vector<8x32xf32>
    %28 = arith.addf %24, %27 : vector<8x32xf32>
    %29 = math.tanh %28 : vector<8x32xf32>
    %30 = arith.subf %7, %29 : vector<8x32xf32>
    %31 = arith.mulf %23, %30 : vector<8x32xf32>
    %32 = arith.addf %29, %31 : vector<8x32xf32>
    %33 = arith.index_cast %c0_i32_6 : i32 to index
    %c0_10 = arith.constant 0 : index
    %c0_11 = arith.constant 0 : index
    %34 = vector.load %arg5[%33, %c0_10, %c0_11] : memref<20x8x32xf32, #tpu.memory_space<vmem>>, vector<1x8x32xf32>
    %35 = vector.shape_cast %34 : vector<1x8x32xf32> to vector<8x32xf32>
    %36 = vector.shape_cast %32 : vector<8x32xf32> to vector<1x8x32xf32>
    tpu.vector_store %arg5[%33, %c0_10, %c0_11], %36 {strides = array<i32>} : memref<20x8x32xf32, #tpu.memory_space<vmem>>, vector<1x8x32xf32>,
    %c1_i32 = arith.constant 1 : i32
    %37 = arith.truncf %32 : vector<8x32xf32> to vector<8x32xbf16>
    %cst_12 = arith.constant dense<0.000000e+00> : vector<8x96xf32>
    %38 = tpu.matmul %37, %3, %cst_12 {dimension_numbers = #tpu.dot_dimension_numbers<[1], [0], [0], [1], [0, 0, 1, 1], [], []>} : vector<8x32xbf16>, vector<32x96xbf16>, vector<8x96xf32> -> vector<8x96xf32>
    %39 = arith.index_cast %c1_i32 : i32 to index
    %c0_13 = arith.constant 0 : index
    %c0_14 = arith.constant 0 : index
    %40 = vector.load %arg2[%39, %c0_13, %c0_14] : memref<20x8x96xbf16, #tpu.memory_space<vmem>>, vector<1x8x96xbf16>
    %41 = vector.shape_cast %40 : vector<1x8x96xbf16> to vector<8x96xbf16>
    %42 = arith.extf %41 : vector<8x96xbf16> to vector<8x96xf32>
    %43 = vector.extract_strided_slice %42 {offsets = [0, 0], sizes = [8, 64], strides = [1, 1]} : vector<8x96xf32> to vector<8x64xf32>
    %44 = vector.extract_strided_slice %38 {offsets = [0, 0], sizes = [8, 64], strides = [1, 1]} : vector<8x96xf32> to vector<8x64xf32>
    %45 = arith.addf %43, %44 : vector<8x64xf32>
    %46 = arith.negf %45 : vector<8x64xf32>
    %47 = math.exp %46 : vector<8x64xf32>
    %cst_15 = arith.constant 1.000000e+00 : f32
    %48 = vector.broadcast %cst_15 : f32 to vector<8x64xf32>
    %49 = arith.addf %48, %47 : vector<8x64xf32>
    %50 = arith.divf %48, %49 : vector<8x64xf32>
    %51 = vector.extract_strided_slice %50 {offsets = [0, 0], sizes = [8, 32], strides = [1, 1]} : vector<8x64xf32> to vector<8x32xf32>
    %52 = vector.extract_strided_slice %50 {offsets = [0, 32], sizes = [8, 32], strides = [1, 1]} : vector<8x64xf32> to vector<8x32xf32>
    %53 = vector.extract_strided_slice %42 {offsets = [0, 64], sizes = [8, 32], strides = [1, 1]} : vector<8x96xf32> to vector<8x32xf32>
    %54 = vector.extract_strided_slice %38 {offsets = [0, 64], sizes = [8, 32], strides = [1, 1]} : vector<8x96xf32> to vector<8x32xf32>
    %55 = arith.addf %54, %6 : vector<8x32xf32>
    %56 = arith.mulf %51, %55 : vector<8x32xf32>
    %57 = arith.addf %53, %56 : vector<8x32xf32>
    %58 = math.tanh %57 : vector<8x32xf32>
    %59 = arith.subf %32, %58 : vector<8x32xf32>
    %60 = arith.mulf %52, %59 : vector<8x32xf32>
    %61 = arith.addf %58, %60 : vector<8x32xf32>
    %62 = arith.index_cast %c1_i32 : i32 to index
    %c0_16 = arith.constant 0 : index
    %c0_17 = arith.constant 0 : index
    %63 = vector.load %arg5[%62, %c0_16, %c0_17] : memref<20x8x32xf32, #tpu.memory_space<vmem>>, vector<1x8x32xf32>
    %64 = vector.shape_cast %63 : vector<1x8x32xf32> to vector<8x32xf32>
    %65 = vector.shape_cast %61 : vector<8x32xf32> to vector<1x8x32xf32>
    tpu.vector_store %arg5[%62, %c0_16, %c0_17], %65 {strides = array<i32>} : memref<20x8x32xf32, #tpu.memory_space<vmem>>, vector<1x8x32xf32>,
    %c2_i32 = arith.constant 2 : i32
    %66 = arith.truncf %61 : vector<8x32xf32> to vector<8x32xbf16>
    %cst_18 = arith.constant dense<0.000000e+00> : vector<8x96xf32>
    %67 = tpu.matmul %66, %3, %cst_18 {dimension_numbers = #tpu.dot_dimension_numbers<[1], [0], [0], [1], [0, 0, 1, 1], [], []>} : vector<8x32xbf16>, vector<32x96xbf16>, vector<8x96xf32> -> vector<8x96xf32>
    %68 = arith.index_cast %c2_i32 : i32 to index
    %c0_19 = arith.constant 0 : index
    %c0_20 = arith.constant 0 : index
    %69 = vector.load %arg2[%68, %c0_19, %c0_20] : memref<20x8x96xbf16, #tpu.memory_space<vmem>>, vector<1x8x96xbf16>
    %70 = vector.shape_cast %69 : vector<1x8x96xbf16> to vector<8x96xbf16>
    %71 = arith.extf %70 : vector<8x96xbf16> to vector<8x96xf32>
    %72 = vector.extract_strided_slice %71 {offsets = [0, 0], sizes = [8, 64], strides = [1, 1]} : vector<8x96xf32> to vector<8x64xf32>
    %73 = vector.extract_strided_slice %67 {offsets = [0, 0], sizes = [8, 64], strides = [1, 1]} : vector<8x96xf32> to vector<8x64xf32>
    %74 = arith.addf %72, %73 : vector<8x64xf32>
    %75 = arith.negf %74 : vector<8x64xf32>
    %76 = math.exp %75 : vector<8x64xf32>
    %cst_21 = arith.constant 1.000000e+00 : f32
    %77 = vector.broadcast %cst_21 : f32 to vector<8x64xf32>
    %78 = arith.addf %77, %76 : vector<8x64xf32>
    %79 = arith.divf %77, %78 : vector<8x64xf32>
    %80 = vector.extract_strided_slice %79 {offsets = [0, 0], sizes = [8, 32], strides = [1, 1]} : vector<8x64xf32> to vector<8x32xf32>
    %81 = vector.extract_strided_slice %79 {offsets = [0, 32], sizes = [8, 32], strides = [1, 1]} : vector<8x64xf32> to vector<8x32xf32>
    %82 = vector.extract_strided_slice %71 {offsets = [0, 64], sizes = [8, 32], strides = [1, 1]} : vector<8x96xf32> to vector<8x32xf32>
    %83 = vector.extract_strided_slice %67 {offsets = [0, 64], sizes = [8, 32], strides = [1, 1]} : vector<8x96xf32> to vector<8x32xf32>
    %84 = arith.addf %83, %6 : vector<8x32xf32>
    %85 = arith.mulf %80, %84 : vector<8x32xf32>
    %86 = arith.addf %82, %85 : vector<8x32xf32>
    %87 = math.tanh %86 : vector<8x32xf32>
    %88 = arith.subf %61, %87 : vector<8x32xf32>
    %89 = arith.mulf %81, %88 : vector<8x32xf32>
    %90 = arith.addf %87, %89 : vector<8x32xf32>
    %91 = arith.index_cast %c2_i32 : i32 to index
    %c0_22 = arith.constant 0 : index
    %c0_23 = arith.constant 0 : index
    %92 = vector.load %arg5[%91, %c0_22, %c0_23] : memref<20x8x32xf32, #tpu.memory_space<vmem>>, vector<1x8x32xf32>
    %93 = vector.shape_cast %92 : vector<1x8x32xf32> to vector<8x32xf32>
    %94 = vector.shape_cast %90 : vector<8x32xf32> to vector<1x8x32xf32>
    tpu.vector_store %arg5[%91, %c0_22, %c0_23], %94 {strides = array<i32>} : memref<20x8x32xf32, #tpu.memory_space<vmem>>, vector<1x8x32xf32>,
    %c3_i32 = arith.constant 3 : i32
    %95 = arith.truncf %90 : vector<8x32xf32> to vector<8x32xbf16>
    %cst_24 = arith.constant dense<0.000000e+00> : vector<8x96xf32>
    %96 = tpu.matmul %95, %3, %cst_24 {dimension_numbers = #tpu.dot_dimension_numbers<[1], [0], [0], [1], [0, 0, 1, 1], [], []>} : vector<8x32xbf16>, vector<32x96xbf16>, vector<8x96xf32> -> vector<8x96xf32>
    %97 = arith.index_cast %c3_i32 : i32 to index
    %c0_25 = arith.constant 0 : index
    %c0_26 = arith.constant 0 : index
    %98 = vector.load %arg2[%97, %c0_25, %c0_26] : memref<20x8x96xbf16, #tpu.memory_space<vmem>>, vector<1x8x96xbf16>
    %99 = vector.shape_cast %98 : vector<1x8x96xbf16> to vector<8x96xbf16>
    %100 = arith.extf %99 : vector<8x96xbf16> to vector<8x96xf32>
    %101 = vector.extract_strided_slice %100 {offsets = [0, 0], sizes = [8, 64], strides = [1, 1]} : vector<8x96xf32> to vector<8x64xf32>
    %102 = vector.extract_strided_slice %96 {offsets = [0, 0], sizes = [8, 64], strides = [1, 1]} : vector<8x96xf32> to vector<8x64xf32>
    %103 = arith.addf %101, %102 : vector<8x64xf32>
    %104 = arith.negf %103 : vector<8x64xf32>
    %105 = math.exp %104 : vector<8x64xf32>
    %cst_27 = arith.constant 1.000000e+00 : f32
    %106 = vector.broadcast %cst_27 : f32 to vector<8x64xf32>
    %107 = arith.addf %106, %105 : vector<8x64xf32>
    %108 = arith.divf %106, %107 : vector<8x64xf32>
    %109 = vector.extract_strided_slice %108 {offsets = [0, 0], sizes = [8, 32], strides = [1, 1]} : vector<8x64xf32> to vector<8x32xf32>
    %110 = vector.extract_strided_slice %108 {offsets = [0, 32], sizes = [8, 32], strides = [1, 1]} : vector<8x64xf32> to vector<8x32xf32>
    %111 = vector.extract_strided_slice %100 {offsets = [0, 64], sizes = [8, 32], strides = [1, 1]} : vector<8x96xf32> to vector<8x32xf32>
    %112 = vector.extract_strided_slice %96 {offsets = [0, 64], sizes = [8, 32], strides = [1, 1]} : vector<8x96xf32> to vector<8x32xf32>
    %113 = arith.addf %112, %6 : vector<8x32xf32>
    %114 = arith.mulf %109, %113 : vector<8x32xf32>
    %115 = arith.addf %111, %114 : vector<8x32xf32>
    %116 = math.tanh %115 : vector<8x32xf32>
    %117 = arith.subf %90, %116 : vector<8x32xf32>
    %118 = arith.mulf %110, %117 : vector<8x32xf32>
    %119 = arith.addf %116, %118 : vector<8x32xf32>
    %120 = arith.index_cast %c3_i32 : i32 to index
    %c0_28 = arith.constant 0 : index
    %c0_29 = arith.constant 0 : index
    %121 = vector.load %arg5[%120, %c0_28, %c0_29] : memref<20x8x32xf32, #tpu.memory_space<vmem>>, vector<1x8x32xf32>
    %122 = vector.shape_cast %121 : vector<1x8x32xf32> to vector<8x32xf32>
    %123 = vector.shape_cast %119 : vector<8x32xf32> to vector<1x8x32xf32>
    tpu.vector_store %arg5[%120, %c0_28, %c0_29], %123 {strides = array<i32>} : memref<20x8x32xf32, #tpu.memory_space<vmem>>, vector<1x8x32xf32>,
    %c4_i32 = arith.constant 4 : i32
    %124 = arith.truncf %119 : vector<8x32xf32> to vector<8x32xbf16>
    %cst_30 = arith.constant dense<0.000000e+00> : vector<8x96xf32>
    %125 = tpu.matmul %124, %3, %cst_30 {dimension_numbers = #tpu.dot_dimension_numbers<[1], [0], [0], [1], [0, 0, 1, 1], [], []>} : vector<8x32xbf16>, vector<32x96xbf16>, vector<8x96xf32> -> vector<8x96xf32>
    %126 = arith.index_cast %c4_i32 : i32 to index
    %c0_31 = arith.constant 0 : index
    %c0_32 = arith.constant 0 : index
    %127 = vector.load %arg2[%126, %c0_31, %c0_32] : memref<20x8x96xbf16, #tpu.memory_space<vmem>>, vector<1x8x96xbf16>
    %128 = vector.shape_cast %127 : vector<1x8x96xbf16> to vector<8x96xbf16>
    %129 = arith.extf %128 : vector<8x96xbf16> to vector<8x96xf32>
    %130 = vector.extract_strided_slice %129 {offsets = [0, 0], sizes = [8, 64], strides = [1, 1]} : vector<8x96xf32> to vector<8x64xf32>
    %131 = vector.extract_strided_slice %125 {offsets = [0, 0], sizes = [8, 64], strides = [1, 1]} : vector<8x96xf32> to vector<8x64xf32>
    %132 = arith.addf %130, %131 : vector<8x64xf32>
    %133 = arith.negf %132 : vector<8x64xf32>
    %134 = math.exp %133 : vector<8x64xf32>
    %cst_33 = arith.constant 1.000000e+00 : f32
    %135 = vector.broadcast %cst_33 : f32 to vector<8x64xf32>
    %136 = arith.addf %135, %134 : vector<8x64xf32>
    %137 = arith.divf %135, %136 : vector<8x64xf32>
    %138 = vector.extract_strided_slice %137 {offsets = [0, 0], sizes = [8, 32], strides = [1, 1]} : vector<8x64xf32> to vector<8x32xf32>
    %139 = vector.extract_strided_slice %137 {offsets = [0, 32], sizes = [8, 32], strides = [1, 1]} : vector<8x64xf32> to vector<8x32xf32>
    %140 = vector.extract_strided_slice %129 {offsets = [0, 64], sizes = [8, 32], strides = [1, 1]} : vector<8x96xf32> to vector<8x32xf32>
    %141 = vector.extract_strided_slice %125 {offsets = [0, 64], sizes = [8, 32], strides = [1, 1]} : vector<8x96xf32> to vector<8x32xf32>
    %142 = arith.addf %141, %6 : vector<8x32xf32>
    %143 = arith.mulf %138, %142 : vector<8x32xf32>
    %144 = arith.addf %140, %143 : vector<8x32xf32>
    %145 = math.tanh %144 : vector<8x32xf32>
    %146 = arith.subf %119, %145 : vector<8x32xf32>
    %147 = arith.mulf %139, %146 : vector<8x32xf32>
    %148 = arith.addf %145, %147 : vector<8x32xf32>
    %149 = arith.index_cast %c4_i32 : i32 to index
    %c0_34 = arith.constant 0 : index
    %c0_35 = arith.constant 0 : index
    %150 = vector.load %arg5[%149, %c0_34, %c0_35] : memref<20x8x32xf32, #tpu.memory_space<vmem>>, vector<1x8x32xf32>
    %151 = vector.shape_cast %150 : vector<1x8x32xf32> to vector<8x32xf32>
    %152 = vector.shape_cast %148 : vector<8x32xf32> to vector<1x8x32xf32>
    tpu.vector_store %arg5[%149, %c0_34, %c0_35], %152 {strides = array<i32>} : memref<20x8x32xf32, #tpu.memory_space<vmem>>, vector<1x8x32xf32>,
    %c5_i32 = arith.constant 5 : i32
    %153 = arith.truncf %148 : vector<8x32xf32> to vector<8x32xbf16>
    %cst_36 = arith.constant dense<0.000000e+00> : vector<8x96xf32>
    %154 = tpu.matmul %153, %3, %cst_36 {dimension_numbers = #tpu.dot_dimension_numbers<[1], [0], [0], [1], [0, 0, 1, 1], [], []>} : vector<8x32xbf16>, vector<32x96xbf16>, vector<8x96xf32> -> vector<8x96xf32>
    %155 = arith.index_cast %c5_i32 : i32 to index
    %c0_37 = arith.constant 0 : index
    %c0_38 = arith.constant 0 : index
    %156 = vector.load %arg2[%155, %c0_37, %c0_38] : memref<20x8x96xbf16, #tpu.memory_space<vmem>>, vector<1x8x96xbf16>
    %157 = vector.shape_cast %156 : vector<1x8x96xbf16> to vector<8x96xbf16>
    %158 = arith.extf %157 : vector<8x96xbf16> to vector<8x96xf32>
    %159 = vector.extract_strided_slice %158 {offsets = [0, 0], sizes = [8, 64], strides = [1, 1]} : vector<8x96xf32> to vector<8x64xf32>
    %160 = vector.extract_strided_slice %154 {offsets = [0, 0], sizes = [8, 64], strides = [1, 1]} : vector<8x96xf32> to vector<8x64xf32>
    %161 = arith.addf %159, %160 : vector<8x64xf32>
    %162 = arith.negf %161 : vector<8x64xf32>
    %163 = math.exp %162 : vector<8x64xf32>
    %cst_39 = arith.constant 1.000000e+00 : f32
    %164 = vector.broadcast %cst_39 : f32 to vector<8x64xf32>
    %165 = arith.addf %164, %163 : vector<8x64xf32>
    %166 = arith.divf %164, %165 : vector<8x64xf32>
    %167 = vector.extract_strided_slice %166 {offsets = [0, 0], sizes = [8, 32], strides = [1, 1]} : vector<8x64xf32> to vector<8x32xf32>
    %168 = vector.extract_strided_slice %166 {offsets = [0, 32], sizes = [8, 32], strides = [1, 1]} : vector<8x64xf32> to vector<8x32xf32>
    %169 = vector.extract_strided_slice %158 {offsets = [0, 64], sizes = [8, 32], strides = [1, 1]} : vector<8x96xf32> to vector<8x32xf32>
    %170 = vector.extract_strided_slice %154 {offsets = [0, 64], sizes = [8, 32], strides = [1, 1]} : vector<8x96xf32> to vector<8x32xf32>
    %171 = arith.addf %170, %6 : vector<8x32xf32>
    %172 = arith.mulf %167, %171 : vector<8x32xf32>
    %173 = arith.addf %169, %172 : vector<8x32xf32>
    %174 = math.tanh %173 : vector<8x32xf32>
    %175 = arith.subf %148, %174 : vector<8x32xf32>
    %176 = arith.mulf %168, %175 : vector<8x32xf32>
    %177 = arith.addf %174, %176 : vector<8x32xf32>
    %178 = arith.index_cast %c5_i32 : i32 to index
    %c0_40 = arith.constant 0 : index
    %c0_41 = arith.constant 0 : index
    %179 = vector.load %arg5[%178, %c0_40, %c0_41] : memref<20x8x32xf32, #tpu.memory_space<vmem>>, vector<1x8x32xf32>
    %180 = vector.shape_cast %179 : vector<1x8x32xf32> to vector<8x32xf32>
    %181 = vector.shape_cast %177 : vector<8x32xf32> to vector<1x8x32xf32>
    tpu.vector_store %arg5[%178, %c0_40, %c0_41], %181 {strides = array<i32>} : memref<20x8x32xf32, #tpu.memory_space<vmem>>, vector<1x8x32xf32>,
    %c6_i32 = arith.constant 6 : i32
    %182 = arith.truncf %177 : vector<8x32xf32> to vector<8x32xbf16>
    %cst_42 = arith.constant dense<0.000000e+00> : vector<8x96xf32>
    %183 = tpu.matmul %182, %3, %cst_42 {dimension_numbers = #tpu.dot_dimension_numbers<[1], [0], [0], [1], [0, 0, 1, 1], [], []>} : vector<8x32xbf16>, vector<32x96xbf16>, vector<8x96xf32> -> vector<8x96xf32>
    %184 = arith.index_cast %c6_i32 : i32 to index
    %c0_43 = arith.constant 0 : index
    %c0_44 = arith.constant 0 : index
    %185 = vector.load %arg2[%184, %c0_43, %c0_44] : memref<20x8x96xbf16, #tpu.memory_space<vmem>>, vector<1x8x96xbf16>
    %186 = vector.shape_cast %185 : vector<1x8x96xbf16> to vector<8x96xbf16>
    %187 = arith.extf %186 : vector<8x96xbf16> to vector<8x96xf32>
    %188 = vector.extract_strided_slice %187 {offsets = [0, 0], sizes = [8, 64], strides = [1, 1]} : vector<8x96xf32> to vector<8x64xf32>
    %189 = vector.extract_strided_slice %183 {offsets = [0, 0], sizes = [8, 64], strides = [1, 1]} : vector<8x96xf32> to vector<8x64xf32>
    %190 = arith.addf %188, %189 : vector<8x64xf32>
    %191 = arith.negf %190 : vector<8x64xf32>
    %192 = math.exp %191 : vector<8x64xf32>
    %cst_45 = arith.constant 1.000000e+00 : f32
    %193 = vector.broadcast %cst_45 : f32 to vector<8x64xf32>
    %194 = arith.addf %193, %192 : vector<8x64xf32>
    %195 = arith.divf %193, %194 : vector<8x64xf32>
    %196 = vector.extract_strided_slice %195 {offsets = [0, 0], sizes = [8, 32], strides = [1, 1]} : vector<8x64xf32> to vector<8x32xf32>
    %197 = vector.extract_strided_slice %195 {offsets = [0, 32], sizes = [8, 32], strides = [1, 1]} : vector<8x64xf32> to vector<8x32xf32>
    %198 = vector.extract_strided_slice %187 {offsets = [0, 64], sizes = [8, 32], strides = [1, 1]} : vector<8x96xf32> to vector<8x32xf32>
    %199 = vector.extract_strided_slice %183 {offsets = [0, 64], sizes = [8, 32], strides = [1, 1]} : vector<8x96xf32> to vector<8x32xf32>
    %200 = arith.addf %199, %6 : vector<8x32xf32>
    %201 = arith.mulf %196, %200 : vector<8x32xf32>
    %202 = arith.addf %198, %201 : vector<8x32xf32>
    %203 = math.tanh %202 : vector<8x32xf32>
    %204 = arith.subf %177, %203 : vector<8x32xf32>
    %205 = arith.mulf %197, %204 : vector<8x32xf32>
    %206 = arith.addf %203, %205 : vector<8x32xf32>
    %207 = arith.index_cast %c6_i32 : i32 to index
    %c0_46 = arith.constant 0 : index
    %c0_47 = arith.constant 0 : index
    %208 = vector.load %arg5[%207, %c0_46, %c0_47] : memref<20x8x32xf32, #tpu.memory_space<vmem>>, vector<1x8x32xf32>
    %209 = vector.shape_cast %208 : vector<1x8x32xf32> to vector<8x32xf32>
    %210 = vector.shape_cast %206 : vector<8x32xf32> to vector<1x8x32xf32>
    tpu.vector_store %arg5[%207, %c0_46, %c0_47], %210 {strides = array<i32>} : memref<20x8x32xf32, #tpu.memory_space<vmem>>, vector<1x8x32xf32>,
    %c7_i32 = arith.constant 7 : i32
    %211 = arith.truncf %206 : vector<8x32xf32> to vector<8x32xbf16>
    %cst_48 = arith.constant dense<0.000000e+00> : vector<8x96xf32>
    %212 = tpu.matmul %211, %3, %cst_48 {dimension_numbers = #tpu.dot_dimension_numbers<[1], [0], [0], [1], [0, 0, 1, 1], [], []>} : vector<8x32xbf16>, vector<32x96xbf16>, vector<8x96xf32> -> vector<8x96xf32>
    %213 = arith.index_cast %c7_i32 : i32 to index
    %c0_49 = arith.constant 0 : index
    %c0_50 = arith.constant 0 : index
    %214 = vector.load %arg2[%213, %c0_49, %c0_50] : memref<20x8x96xbf16, #tpu.memory_space<vmem>>, vector<1x8x96xbf16>
    %215 = vector.shape_cast %214 : vector<1x8x96xbf16> to vector<8x96xbf16>
    %216 = arith.extf %215 : vector<8x96xbf16> to vector<8x96xf32>
    %217 = vector.extract_strided_slice %216 {offsets = [0, 0], sizes = [8, 64], strides = [1, 1]} : vector<8x96xf32> to vector<8x64xf32>
    %218 = vector.extract_strided_slice %212 {offsets = [0, 0], sizes = [8, 64], strides = [1, 1]} : vector<8x96xf32> to vector<8x64xf32>
    %219 = arith.addf %217, %218 : vector<8x64xf32>
    %220 = arith.negf %219 : vector<8x64xf32>
    %221 = math.exp %220 : vector<8x64xf32>
    %cst_51 = arith.constant 1.000000e+00 : f32
    %222 = vector.broadcast %cst_51 : f32 to vector<8x64xf32>
    %223 = arith.addf %222, %221 : vector<8x64xf32>
    %224 = arith.divf %222, %223 : vector<8x64xf32>
    %225 = vector.extract_strided_slice %224 {offsets = [0, 0], sizes = [8, 32], strides = [1, 1]} : vector<8x64xf32> to vector<8x32xf32>
    %226 = vector.extract_strided_slice %224 {offsets = [0, 32], sizes = [8, 32], strides = [1, 1]} : vector<8x64xf32> to vector<8x32xf32>
    %227 = vector.extract_strided_slice %216 {offsets = [0, 64], sizes = [8, 32], strides = [1, 1]} : vector<8x96xf32> to vector<8x32xf32>
    %228 = vector.extract_strided_slice %212 {offsets = [0, 64], sizes = [8, 32], strides = [1, 1]} : vector<8x96xf32> to vector<8x32xf32>
    %229 = arith.addf %228, %6 : vector<8x32xf32>
    %230 = arith.mulf %225, %229 : vector<8x32xf32>
    %231 = arith.addf %227, %230 : vector<8x32xf32>
    %232 = math.tanh %231 : vector<8x32xf32>
    %233 = arith.subf %206, %232 : vector<8x32xf32>
    %234 = arith.mulf %226, %233 : vector<8x32xf32>
    %235 = arith.addf %232, %234 : vector<8x32xf32>
    %236 = arith.index_cast %c7_i32 : i32 to index
    %c0_52 = arith.constant 0 : index
    %c0_53 = arith.constant 0 : index
    %237 = vector.load %arg5[%236, %c0_52, %c0_53] : memref<20x8x32xf32, #tpu.memory_space<vmem>>, vector<1x8x32xf32>
    %238 = vector.shape_cast %237 : vector<1x8x32xf32> to vector<8x32xf32>
    %239 = vector.shape_cast %235 : vector<8x32xf32> to vector<1x8x32xf32>
    tpu.vector_store %arg5[%236, %c0_52, %c0_53], %239 {strides = array<i32>} : memref<20x8x32xf32, #tpu.memory_space<vmem>>, vector<1x8x32xf32>,
    %c8_i32 = arith.constant 8 : i32
    %240 = arith.truncf %235 : vector<8x32xf32> to vector<8x32xbf16>
    %cst_54 = arith.constant dense<0.000000e+00> : vector<8x96xf32>
    %241 = tpu.matmul %240, %3, %cst_54 {dimension_numbers = #tpu.dot_dimension_numbers<[1], [0], [0], [1], [0, 0, 1, 1], [], []>} : vector<8x32xbf16>, vector<32x96xbf16>, vector<8x96xf32> -> vector<8x96xf32>
    %242 = arith.index_cast %c8_i32 : i32 to index
    %c0_55 = arith.constant 0 : index
    %c0_56 = arith.constant 0 : index
    %243 = vector.load %arg2[%242, %c0_55, %c0_56] : memref<20x8x96xbf16, #tpu.memory_space<vmem>>, vector<1x8x96xbf16>
    %244 = vector.shape_cast %243 : vector<1x8x96xbf16> to vector<8x96xbf16>
    %245 = arith.extf %244 : vector<8x96xbf16> to vector<8x96xf32>
    %246 = vector.extract_strided_slice %245 {offsets = [0, 0], sizes = [8, 64], strides = [1, 1]} : vector<8x96xf32> to vector<8x64xf32>
    %247 = vector.extract_strided_slice %241 {offsets = [0, 0], sizes = [8, 64], strides = [1, 1]} : vector<8x96xf32> to vector<8x64xf32>
    %248 = arith.addf %246, %247 : vector<8x64xf32>
    %249 = arith.negf %248 : vector<8x64xf32>
    %250 = math.exp %249 : vector<8x64xf32>
    %cst_57 = arith.constant 1.000000e+00 : f32
    %251 = vector.broadcast %cst_57 : f32 to vector<8x64xf32>
    %252 = arith.addf %251, %250 : vector<8x64xf32>
    %253 = arith.divf %251, %252 : vector<8x64xf32>
    %254 = vector.extract_strided_slice %253 {offsets = [0, 0], sizes = [8, 32], strides = [1, 1]} : vector<8x64xf32> to vector<8x32xf32>
    %255 = vector.extract_strided_slice %253 {offsets = [0, 32], sizes = [8, 32], strides = [1, 1]} : vector<8x64xf32> to vector<8x32xf32>
    %256 = vector.extract_strided_slice %245 {offsets = [0, 64], sizes = [8, 32], strides = [1, 1]} : vector<8x96xf32> to vector<8x32xf32>
    %257 = vector.extract_strided_slice %241 {offsets = [0, 64], sizes = [8, 32], strides = [1, 1]} : vector<8x96xf32> to vector<8x32xf32>
    %258 = arith.addf %257, %6 : vector<8x32xf32>
    %259 = arith.mulf %254, %258 : vector<8x32xf32>
    %260 = arith.addf %256, %259 : vector<8x32xf32>
    %261 = math.tanh %260 : vector<8x32xf32>
    %262 = arith.subf %235, %261 : vector<8x32xf32>
    %263 = arith.mulf %255, %262 : vector<8x32xf32>
    %264 = arith.addf %261, %263 : vector<8x32xf32>
    %265 = arith.index_cast %c8_i32 : i32 to index
    %c0_58 = arith.constant 0 : index
    %c0_59 = arith.constant 0 : index
    %266 = vector.load %arg5[%265, %c0_58, %c0_59] : memref<20x8x32xf32, #tpu.memory_space<vmem>>, vector<1x8x32xf32>
    %267 = vector.shape_cast %266 : vector<1x8x32xf32> to vector<8x32xf32>
    %268 = vector.shape_cast %264 : vector<8x32xf32> to vector<1x8x32xf32>
    tpu.vector_store %arg5[%265, %c0_58, %c0_59], %268 {strides = array<i32>} : memref<20x8x32xf32, #tpu.memory_space<vmem>>, vector<1x8x32xf32>,
    %c9_i32 = arith.constant 9 : i32
    %269 = arith.truncf %264 : vector<8x32xf32> to vector<8x32xbf16>
    %cst_60 = arith.constant dense<0.000000e+00> : vector<8x96xf32>
    %270 = tpu.matmul %269, %3, %cst_60 {dimension_numbers = #tpu.dot_dimension_numbers<[1], [0], [0], [1], [0, 0, 1, 1], [], []>} : vector<8x32xbf16>, vector<32x96xbf16>, vector<8x96xf32> -> vector<8x96xf32>
    %271 = arith.index_cast %c9_i32 : i32 to index
    %c0_61 = arith.constant 0 : index
    %c0_62 = arith.constant 0 : index
    %272 = vector.load %arg2[%271, %c0_61, %c0_62] : memref<20x8x96xbf16, #tpu.memory_space<vmem>>, vector<1x8x96xbf16>
    %273 = vector.shape_cast %272 : vector<1x8x96xbf16> to vector<8x96xbf16>
    %274 = arith.extf %273 : vector<8x96xbf16> to vector<8x96xf32>
    %275 = vector.extract_strided_slice %274 {offsets = [0, 0], sizes = [8, 64], strides = [1, 1]} : vector<8x96xf32> to vector<8x64xf32>
    %276 = vector.extract_strided_slice %270 {offsets = [0, 0], sizes = [8, 64], strides = [1, 1]} : vector<8x96xf32> to vector<8x64xf32>
    %277 = arith.addf %275, %276 : vector<8x64xf32>
    %278 = arith.negf %277 : vector<8x64xf32>
    %279 = math.exp %278 : vector<8x64xf32>
    %cst_63 = arith.constant 1.000000e+00 : f32
    %280 = vector.broadcast %cst_63 : f32 to vector<8x64xf32>
    %281 = arith.addf %280, %279 : vector<8x64xf32>
    %282 = arith.divf %280, %281 : vector<8x64xf32>
    %283 = vector.extract_strided_slice %282 {offsets = [0, 0], sizes = [8, 32], strides = [1, 1]} : vector<8x64xf32> to vector<8x32xf32>
    %284 = vector.extract_strided_slice %282 {offsets = [0, 32], sizes = [8, 32], strides = [1, 1]} : vector<8x64xf32> to vector<8x32xf32>
    %285 = vector.extract_strided_slice %274 {offsets = [0, 64], sizes = [8, 32], strides = [1, 1]} : vector<8x96xf32> to vector<8x32xf32>
    %286 = vector.extract_strided_slice %270 {offsets = [0, 64], sizes = [8, 32], strides = [1, 1]} : vector<8x96xf32> to vector<8x32xf32>
    %287 = arith.addf %286, %6 : vector<8x32xf32>
    %288 = arith.mulf %283, %287 : vector<8x32xf32>
    %289 = arith.addf %285, %288 : vector<8x32xf32>
    %290 = math.tanh %289 : vector<8x32xf32>
    %291 = arith.subf %264, %290 : vector<8x32xf32>
    %292 = arith.mulf %284, %291 : vector<8x32xf32>
    %293 = arith.addf %290, %292 : vector<8x32xf32>
    %294 = arith.index_cast %c9_i32 : i32 to index
    %c0_64 = arith.constant 0 : index
    %c0_65 = arith.constant 0 : index
    %295 = vector.load %arg5[%294, %c0_64, %c0_65] : memref<20x8x32xf32, #tpu.memory_space<vmem>>, vector<1x8x32xf32>
    %296 = vector.shape_cast %295 : vector<1x8x32xf32> to vector<8x32xf32>
    %297 = vector.shape_cast %293 : vector<8x32xf32> to vector<1x8x32xf32>
    tpu.vector_store %arg5[%294, %c0_64, %c0_65], %297 {strides = array<i32>} : memref<20x8x32xf32, #tpu.memory_space<vmem>>, vector<1x8x32xf32>,
    %c10_i32 = arith.constant 10 : i32
    %298 = arith.truncf %293 : vector<8x32xf32> to vector<8x32xbf16>
    %cst_66 = arith.constant dense<0.000000e+00> : vector<8x96xf32>
    %299 = tpu.matmul %298, %3, %cst_66 {dimension_numbers = #tpu.dot_dimension_numbers<[1], [0], [0], [1], [0, 0, 1, 1], [], []>} : vector<8x32xbf16>, vector<32x96xbf16>, vector<8x96xf32> -> vector<8x96xf32>
    %300 = arith.index_cast %c10_i32 : i32 to index
    %c0_67 = arith.constant 0 : index
    %c0_68 = arith.constant 0 : index
    %301 = vector.load %arg2[%300, %c0_67, %c0_68] : memref<20x8x96xbf16, #tpu.memory_space<vmem>>, vector<1x8x96xbf16>
    %302 = vector.shape_cast %301 : vector<1x8x96xbf16> to vector<8x96xbf16>
    %303 = arith.extf %302 : vector<8x96xbf16> to vector<8x96xf32>
    %304 = vector.extract_strided_slice %303 {offsets = [0, 0], sizes = [8, 64], strides = [1, 1]} : vector<8x96xf32> to vector<8x64xf32>
    %305 = vector.extract_strided_slice %299 {offsets = [0, 0], sizes = [8, 64], strides = [1, 1]} : vector<8x96xf32> to vector<8x64xf32>
    %306 = arith.addf %304, %305 : vector<8x64xf32>
    %307 = arith.negf %306 : vector<8x64xf32>
    %308 = math.exp %307 : vector<8x64xf32>
    %cst_69 = arith.constant 1.000000e+00 : f32
    %309 = vector.broadcast %cst_69 : f32 to vector<8x64xf32>
    %310 = arith.addf %309, %308 : vector<8x64xf32>
    %311 = arith.divf %309, %310 : vector<8x64xf32>
    %312 = vector.extract_strided_slice %311 {offsets = [0, 0], sizes = [8, 32], strides = [1, 1]} : vector<8x64xf32> to vector<8x32xf32>
    %313 = vector.extract_strided_slice %311 {offsets = [0, 32], sizes = [8, 32], strides = [1, 1]} : vector<8x64xf32> to vector<8x32xf32>
    %314 = vector.extract_strided_slice %303 {offsets = [0, 64], sizes = [8, 32], strides = [1, 1]} : vector<8x96xf32> to vector<8x32xf32>
    %315 = vector.extract_strided_slice %299 {offsets = [0, 64], sizes = [8, 32], strides = [1, 1]} : vector<8x96xf32> to vector<8x32xf32>
    %316 = arith.addf %315, %6 : vector<8x32xf32>
    %317 = arith.mulf %312, %316 : vector<8x32xf32>
    %318 = arith.addf %314, %317 : vector<8x32xf32>
    %319 = math.tanh %318 : vector<8x32xf32>
    %320 = arith.subf %293, %319 : vector<8x32xf32>
    %321 = arith.mulf %313, %320 : vector<8x32xf32>
    %322 = arith.addf %319, %321 : vector<8x32xf32>
    %323 = arith.index_cast %c10_i32 : i32 to index
    %c0_70 = arith.constant 0 : index
    %c0_71 = arith.constant 0 : index
    %324 = vector.load %arg5[%323, %c0_70, %c0_71] : memref<20x8x32xf32, #tpu.memory_space<vmem>>, vector<1x8x32xf32>
    %325 = vector.shape_cast %324 : vector<1x8x32xf32> to vector<8x32xf32>
    %326 = vector.shape_cast %322 : vector<8x32xf32> to vector<1x8x32xf32>
    tpu.vector_store %arg5[%323, %c0_70, %c0_71], %326 {strides = array<i32>} : memref<20x8x32xf32, #tpu.memory_space<vmem>>, vector<1x8x32xf32>,
    %c11_i32 = arith.constant 11 : i32
    %327 = arith.truncf %322 : vector<8x32xf32> to vector<8x32xbf16>
    %cst_72 = arith.constant dense<0.000000e+00> : vector<8x96xf32>
    %328 = tpu.matmul %327, %3, %cst_72 {dimension_numbers = #tpu.dot_dimension_numbers<[1], [0], [0], [1], [0, 0, 1, 1], [], []>} : vector<8x32xbf16>, vector<32x96xbf16>, vector<8x96xf32> -> vector<8x96xf32>
    %329 = arith.index_cast %c11_i32 : i32 to index
    %c0_73 = arith.constant 0 : index
    %c0_74 = arith.constant 0 : index
    %330 = vector.load %arg2[%329, %c0_73, %c0_74] : memref<20x8x96xbf16, #tpu.memory_space<vmem>>, vector<1x8x96xbf16>
    %331 = vector.shape_cast %330 : vector<1x8x96xbf16> to vector<8x96xbf16>
    %332 = arith.extf %331 : vector<8x96xbf16> to vector<8x96xf32>
    %333 = vector.extract_strided_slice %332 {offsets = [0, 0], sizes = [8, 64], strides = [1, 1]} : vector<8x96xf32> to vector<8x64xf32>
    %334 = vector.extract_strided_slice %328 {offsets = [0, 0], sizes = [8, 64], strides = [1, 1]} : vector<8x96xf32> to vector<8x64xf32>
    %335 = arith.addf %333, %334 : vector<8x64xf32>
    %336 = arith.negf %335 : vector<8x64xf32>
    %337 = math.exp %336 : vector<8x64xf32>
    %cst_75 = arith.constant 1.000000e+00 : f32
    %338 = vector.broadcast %cst_75 : f32 to vector<8x64xf32>
    %339 = arith.addf %338, %337 : vector<8x64xf32>
    %340 = arith.divf %338, %339 : vector<8x64xf32>
    %341 = vector.extract_strided_slice %340 {offsets = [0, 0], sizes = [8, 32], strides = [1, 1]} : vector<8x64xf32> to vector<8x32xf32>
    %342 = vector.extract_strided_slice %340 {offsets = [0, 32], sizes = [8, 32], strides = [1, 1]} : vector<8x64xf32> to vector<8x32xf32>
    %343 = vector.extract_strided_slice %332 {offsets = [0, 64], sizes = [8, 32], strides = [1, 1]} : vector<8x96xf32> to vector<8x32xf32>
    %344 = vector.extract_strided_slice %328 {offsets = [0, 64], sizes = [8, 32], strides = [1, 1]} : vector<8x96xf32> to vector<8x32xf32>
    %345 = arith.addf %344, %6 : vector<8x32xf32>
    %346 = arith.mulf %341, %345 : vector<8x32xf32>
    %347 = arith.addf %343, %346 : vector<8x32xf32>
    %348 = math.tanh %347 : vector<8x32xf32>
    %349 = arith.subf %322, %348 : vector<8x32xf32>
    %350 = arith.mulf %342, %349 : vector<8x32xf32>
    %351 = arith.addf %348, %350 : vector<8x32xf32>
    %352 = arith.index_cast %c11_i32 : i32 to index
    %c0_76 = arith.constant 0 : index
    %c0_77 = arith.constant 0 : index
    %353 = vector.load %arg5[%352, %c0_76, %c0_77] : memref<20x8x32xf32, #tpu.memory_space<vmem>>, vector<1x8x32xf32>
    %354 = vector.shape_cast %353 : vector<1x8x32xf32> to vector<8x32xf32>
    %355 = vector.shape_cast %351 : vector<8x32xf32> to vector<1x8x32xf32>
    tpu.vector_store %arg5[%352, %c0_76, %c0_77], %355 {strides = array<i32>} : memref<20x8x32xf32, #tpu.memory_space<vmem>>, vector<1x8x32xf32>,
    %c12_i32 = arith.constant 12 : i32
    %356 = arith.truncf %351 : vector<8x32xf32> to vector<8x32xbf16>
    %cst_78 = arith.constant dense<0.000000e+00> : vector<8x96xf32>
    %357 = tpu.matmul %356, %3, %cst_78 {dimension_numbers = #tpu.dot_dimension_numbers<[1], [0], [0], [1], [0, 0, 1, 1], [], []>} : vector<8x32xbf16>, vector<32x96xbf16>, vector<8x96xf32> -> vector<8x96xf32>
    %358 = arith.index_cast %c12_i32 : i32 to index
    %c0_79 = arith.constant 0 : index
    %c0_80 = arith.constant 0 : index
    %359 = vector.load %arg2[%358, %c0_79, %c0_80] : memref<20x8x96xbf16, #tpu.memory_space<vmem>>, vector<1x8x96xbf16>
    %360 = vector.shape_cast %359 : vector<1x8x96xbf16> to vector<8x96xbf16>
    %361 = arith.extf %360 : vector<8x96xbf16> to vector<8x96xf32>
    %362 = vector.extract_strided_slice %361 {offsets = [0, 0], sizes = [8, 64], strides = [1, 1]} : vector<8x96xf32> to vector<8x64xf32>
    %363 = vector.extract_strided_slice %357 {offsets = [0, 0], sizes = [8, 64], strides = [1, 1]} : vector<8x96xf32> to vector<8x64xf32>
    %364 = arith.addf %362, %363 : vector<8x64xf32>
    %365 = arith.negf %364 : vector<8x64xf32>
    %366 = math.exp %365 : vector<8x64xf32>
    %cst_81 = arith.constant 1.000000e+00 : f32
    %367 = vector.broadcast %cst_81 : f32 to vector<8x64xf32>
    %368 = arith.addf %367, %366 : vector<8x64xf32>
    %369 = arith.divf %367, %368 : vector<8x64xf32>
    %370 = vector.extract_strided_slice %369 {offsets = [0, 0], sizes = [8, 32], strides = [1, 1]} : vector<8x64xf32> to vector<8x32xf32>
    %371 = vector.extract_strided_slice %369 {offsets = [0, 32], sizes = [8, 32], strides = [1, 1]} : vector<8x64xf32> to vector<8x32xf32>
    %372 = vector.extract_strided_slice %361 {offsets = [0, 64], sizes = [8, 32], strides = [1, 1]} : vector<8x96xf32> to vector<8x32xf32>
    %373 = vector.extract_strided_slice %357 {offsets = [0, 64], sizes = [8, 32], strides = [1, 1]} : vector<8x96xf32> to vector<8x32xf32>
    %374 = arith.addf %373, %6 : vector<8x32xf32>
    %375 = arith.mulf %370, %374 : vector<8x32xf32>
    %376 = arith.addf %372, %375 : vector<8x32xf32>
    %377 = math.tanh %376 : vector<8x32xf32>
    %378 = arith.subf %351, %377 : vector<8x32xf32>
    %379 = arith.mulf %371, %378 : vector<8x32xf32>
    %380 = arith.addf %377, %379 : vector<8x32xf32>
    %381 = arith.index_cast %c12_i32 : i32 to index
    %c0_82 = arith.constant 0 : index
    %c0_83 = arith.constant 0 : index
    %382 = vector.load %arg5[%381, %c0_82, %c0_83] : memref<20x8x32xf32, #tpu.memory_space<vmem>>, vector<1x8x32xf32>
    %383 = vector.shape_cast %382 : vector<1x8x32xf32> to vector<8x32xf32>
    %384 = vector.shape_cast %380 : vector<8x32xf32> to vector<1x8x32xf32>
    tpu.vector_store %arg5[%381, %c0_82, %c0_83], %384 {strides = array<i32>} : memref<20x8x32xf32, #tpu.memory_space<vmem>>, vector<1x8x32xf32>,
    %c13_i32 = arith.constant 13 : i32
    %385 = arith.truncf %380 : vector<8x32xf32> to vector<8x32xbf16>
    %cst_84 = arith.constant dense<0.000000e+00> : vector<8x96xf32>
    %386 = tpu.matmul %385, %3, %cst_84 {dimension_numbers = #tpu.dot_dimension_numbers<[1], [0], [0], [1], [0, 0, 1, 1], [], []>} : vector<8x32xbf16>, vector<32x96xbf16>, vector<8x96xf32> -> vector<8x96xf32>
    %387 = arith.index_cast %c13_i32 : i32 to index
    %c0_85 = arith.constant 0 : index
    %c0_86 = arith.constant 0 : index
    %388 = vector.load %arg2[%387, %c0_85, %c0_86] : memref<20x8x96xbf16, #tpu.memory_space<vmem>>, vector<1x8x96xbf16>
    %389 = vector.shape_cast %388 : vector<1x8x96xbf16> to vector<8x96xbf16>
    %390 = arith.extf %389 : vector<8x96xbf16> to vector<8x96xf32>
    %391 = vector.extract_strided_slice %390 {offsets = [0, 0], sizes = [8, 64], strides = [1, 1]} : vector<8x96xf32> to vector<8x64xf32>
    %392 = vector.extract_strided_slice %386 {offsets = [0, 0], sizes = [8, 64], strides = [1, 1]} : vector<8x96xf32> to vector<8x64xf32>
    %393 = arith.addf %391, %392 : vector<8x64xf32>
    %394 = arith.negf %393 : vector<8x64xf32>
    %395 = math.exp %394 : vector<8x64xf32>
    %cst_87 = arith.constant 1.000000e+00 : f32
    %396 = vector.broadcast %cst_87 : f32 to vector<8x64xf32>
    %397 = arith.addf %396, %395 : vector<8x64xf32>
    %398 = arith.divf %396, %397 : vector<8x64xf32>
    %399 = vector.extract_strided_slice %398 {offsets = [0, 0], sizes = [8, 32], strides = [1, 1]} : vector<8x64xf32> to vector<8x32xf32>
    %400 = vector.extract_strided_slice %398 {offsets = [0, 32], sizes = [8, 32], strides = [1, 1]} : vector<8x64xf32> to vector<8x32xf32>
    %401 = vector.extract_strided_slice %390 {offsets = [0, 64], sizes = [8, 32], strides = [1, 1]} : vector<8x96xf32> to vector<8x32xf32>
    %402 = vector.extract_strided_slice %386 {offsets = [0, 64], sizes = [8, 32], strides = [1, 1]} : vector<8x96xf32> to vector<8x32xf32>
    %403 = arith.addf %402, %6 : vector<8x32xf32>
    %404 = arith.mulf %399, %403 : vector<8x32xf32>
    %405 = arith.addf %401, %404 : vector<8x32xf32>
    %406 = math.tanh %405 : vector<8x32xf32>
    %407 = arith.subf %380, %406 : vector<8x32xf32>
    %408 = arith.mulf %400, %407 : vector<8x32xf32>
    %409 = arith.addf %406, %408 : vector<8x32xf32>
    %410 = arith.index_cast %c13_i32 : i32 to index
    %c0_88 = arith.constant 0 : index
    %c0_89 = arith.constant 0 : index
    %411 = vector.load %arg5[%410, %c0_88, %c0_89] : memref<20x8x32xf32, #tpu.memory_space<vmem>>, vector<1x8x32xf32>
    %412 = vector.shape_cast %411 : vector<1x8x32xf32> to vector<8x32xf32>
    %413 = vector.shape_cast %409 : vector<8x32xf32> to vector<1x8x32xf32>
    tpu.vector_store %arg5[%410, %c0_88, %c0_89], %413 {strides = array<i32>} : memref<20x8x32xf32, #tpu.memory_space<vmem>>, vector<1x8x32xf32>,
    %c14_i32 = arith.constant 14 : i32
    %414 = arith.truncf %409 : vector<8x32xf32> to vector<8x32xbf16>
    %cst_90 = arith.constant dense<0.000000e+00> : vector<8x96xf32>
    %415 = tpu.matmul %414, %3, %cst_90 {dimension_numbers = #tpu.dot_dimension_numbers<[1], [0], [0], [1], [0, 0, 1, 1], [], []>} : vector<8x32xbf16>, vector<32x96xbf16>, vector<8x96xf32> -> vector<8x96xf32>
    %416 = arith.index_cast %c14_i32 : i32 to index
    %c0_91 = arith.constant 0 : index
    %c0_92 = arith.constant 0 : index
    %417 = vector.load %arg2[%416, %c0_91, %c0_92] : memref<20x8x96xbf16, #tpu.memory_space<vmem>>, vector<1x8x96xbf16>
    %418 = vector.shape_cast %417 : vector<1x8x96xbf16> to vector<8x96xbf16>
    %419 = arith.extf %418 : vector<8x96xbf16> to vector<8x96xf32>
    %420 = vector.extract_strided_slice %419 {offsets = [0, 0], sizes = [8, 64], strides = [1, 1]} : vector<8x96xf32> to vector<8x64xf32>
    %421 = vector.extract_strided_slice %415 {offsets = [0, 0], sizes = [8, 64], strides = [1, 1]} : vector<8x96xf32> to vector<8x64xf32>
    %422 = arith.addf %420, %421 : vector<8x64xf32>
    %423 = arith.negf %422 : vector<8x64xf32>
    %424 = math.exp %423 : vector<8x64xf32>
    %cst_93 = arith.constant 1.000000e+00 : f32
    %425 = vector.broadcast %cst_93 : f32 to vector<8x64xf32>
    %426 = arith.addf %425, %424 : vector<8x64xf32>
    %427 = arith.divf %425, %426 : vector<8x64xf32>
    %428 = vector.extract_strided_slice %427 {offsets = [0, 0], sizes = [8, 32], strides = [1, 1]} : vector<8x64xf32> to vector<8x32xf32>
    %429 = vector.extract_strided_slice %427 {offsets = [0, 32], sizes = [8, 32], strides = [1, 1]} : vector<8x64xf32> to vector<8x32xf32>
    %430 = vector.extract_strided_slice %419 {offsets = [0, 64], sizes = [8, 32], strides = [1, 1]} : vector<8x96xf32> to vector<8x32xf32>
    %431 = vector.extract_strided_slice %415 {offsets = [0, 64], sizes = [8, 32], strides = [1, 1]} : vector<8x96xf32> to vector<8x32xf32>
    %432 = arith.addf %431, %6 : vector<8x32xf32>
    %433 = arith.mulf %428, %432 : vector<8x32xf32>
    %434 = arith.addf %430, %433 : vector<8x32xf32>
    %435 = math.tanh %434 : vector<8x32xf32>
    %436 = arith.subf %409, %435 : vector<8x32xf32>
    %437 = arith.mulf %429, %436 : vector<8x32xf32>
    %438 = arith.addf %435, %437 : vector<8x32xf32>
    %439 = arith.index_cast %c14_i32 : i32 to index
    %c0_94 = arith.constant 0 : index
    %c0_95 = arith.constant 0 : index
    %440 = vector.load %arg5[%439, %c0_94, %c0_95] : memref<20x8x32xf32, #tpu.memory_space<vmem>>, vector<1x8x32xf32>
    %441 = vector.shape_cast %440 : vector<1x8x32xf32> to vector<8x32xf32>
    %442 = vector.shape_cast %438 : vector<8x32xf32> to vector<1x8x32xf32>
    tpu.vector_store %arg5[%439, %c0_94, %c0_95], %442 {strides = array<i32>} : memref<20x8x32xf32, #tpu.memory_space<vmem>>, vector<1x8x32xf32>,
    %c15_i32 = arith.constant 15 : i32
    %443 = arith.truncf %438 : vector<8x32xf32> to vector<8x32xbf16>
    %cst_96 = arith.constant dense<0.000000e+00> : vector<8x96xf32>
    %444 = tpu.matmul %443, %3, %cst_96 {dimension_numbers = #tpu.dot_dimension_numbers<[1], [0], [0], [1], [0, 0, 1, 1], [], []>} : vector<8x32xbf16>, vector<32x96xbf16>, vector<8x96xf32> -> vector<8x96xf32>
    %445 = arith.index_cast %c15_i32 : i32 to index
    %c0_97 = arith.constant 0 : index
    %c0_98 = arith.constant 0 : index
    %446 = vector.load %arg2[%445, %c0_97, %c0_98] : memref<20x8x96xbf16, #tpu.memory_space<vmem>>, vector<1x8x96xbf16>
    %447 = vector.shape_cast %446 : vector<1x8x96xbf16> to vector<8x96xbf16>
    %448 = arith.extf %447 : vector<8x96xbf16> to vector<8x96xf32>
    %449 = vector.extract_strided_slice %448 {offsets = [0, 0], sizes = [8, 64], strides = [1, 1]} : vector<8x96xf32> to vector<8x64xf32>
    %450 = vector.extract_strided_slice %444 {offsets = [0, 0], sizes = [8, 64], strides = [1, 1]} : vector<8x96xf32> to vector<8x64xf32>
    %451 = arith.addf %449, %450 : vector<8x64xf32>
    %452 = arith.negf %451 : vector<8x64xf32>
    %453 = math.exp %452 : vector<8x64xf32>
    %cst_99 = arith.constant 1.000000e+00 : f32
    %454 = vector.broadcast %cst_99 : f32 to vector<8x64xf32>
    %455 = arith.addf %454, %453 : vector<8x64xf32>
    %456 = arith.divf %454, %455 : vector<8x64xf32>
    %457 = vector.extract_strided_slice %456 {offsets = [0, 0], sizes = [8, 32], strides = [1, 1]} : vector<8x64xf32> to vector<8x32xf32>
    %458 = vector.extract_strided_slice %456 {offsets = [0, 32], sizes = [8, 32], strides = [1, 1]} : vector<8x64xf32> to vector<8x32xf32>
    %459 = vector.extract_strided_slice %448 {offsets = [0, 64], sizes = [8, 32], strides = [1, 1]} : vector<8x96xf32> to vector<8x32xf32>
    %460 = vector.extract_strided_slice %444 {offsets = [0, 64], sizes = [8, 32], strides = [1, 1]} : vector<8x96xf32> to vector<8x32xf32>
    %461 = arith.addf %460, %6 : vector<8x32xf32>
    %462 = arith.mulf %457, %461 : vector<8x32xf32>
    %463 = arith.addf %459, %462 : vector<8x32xf32>
    %464 = math.tanh %463 : vector<8x32xf32>
    %465 = arith.subf %438, %464 : vector<8x32xf32>
    %466 = arith.mulf %458, %465 : vector<8x32xf32>
    %467 = arith.addf %464, %466 : vector<8x32xf32>
    %468 = arith.index_cast %c15_i32 : i32 to index
    %c0_100 = arith.constant 0 : index
    %c0_101 = arith.constant 0 : index
    %469 = vector.load %arg5[%468, %c0_100, %c0_101] : memref<20x8x32xf32, #tpu.memory_space<vmem>>, vector<1x8x32xf32>
    %470 = vector.shape_cast %469 : vector<1x8x32xf32> to vector<8x32xf32>
    %471 = vector.shape_cast %467 : vector<8x32xf32> to vector<1x8x32xf32>
    tpu.vector_store %arg5[%468, %c0_100, %c0_101], %471 {strides = array<i32>} : memref<20x8x32xf32, #tpu.memory_space<vmem>>, vector<1x8x32xf32>,
    %c16_i32 = arith.constant 16 : i32
    %472 = arith.truncf %467 : vector<8x32xf32> to vector<8x32xbf16>
    %cst_102 = arith.constant dense<0.000000e+00> : vector<8x96xf32>
    %473 = tpu.matmul %472, %3, %cst_102 {dimension_numbers = #tpu.dot_dimension_numbers<[1], [0], [0], [1], [0, 0, 1, 1], [], []>} : vector<8x32xbf16>, vector<32x96xbf16>, vector<8x96xf32> -> vector<8x96xf32>
    %474 = arith.index_cast %c16_i32 : i32 to index
    %c0_103 = arith.constant 0 : index
    %c0_104 = arith.constant 0 : index
    %475 = vector.load %arg2[%474, %c0_103, %c0_104] : memref<20x8x96xbf16, #tpu.memory_space<vmem>>, vector<1x8x96xbf16>
    %476 = vector.shape_cast %475 : vector<1x8x96xbf16> to vector<8x96xbf16>
    %477 = arith.extf %476 : vector<8x96xbf16> to vector<8x96xf32>
    %478 = vector.extract_strided_slice %477 {offsets = [0, 0], sizes = [8, 64], strides = [1, 1]} : vector<8x96xf32> to vector<8x64xf32>
    %479 = vector.extract_strided_slice %473 {offsets = [0, 0], sizes = [8, 64], strides = [1, 1]} : vector<8x96xf32> to vector<8x64xf32>
    %480 = arith.addf %478, %479 : vector<8x64xf32>
    %481 = arith.negf %480 : vector<8x64xf32>
    %482 = math.exp %481 : vector<8x64xf32>
    %cst_105 = arith.constant 1.000000e+00 : f32
    %483 = vector.broadcast %cst_105 : f32 to vector<8x64xf32>
    %484 = arith.addf %483, %482 : vector<8x64xf32>
    %485 = arith.divf %483, %484 : vector<8x64xf32>
    %486 = vector.extract_strided_slice %485 {offsets = [0, 0], sizes = [8, 32], strides = [1, 1]} : vector<8x64xf32> to vector<8x32xf32>
    %487 = vector.extract_strided_slice %485 {offsets = [0, 32], sizes = [8, 32], strides = [1, 1]} : vector<8x64xf32> to vector<8x32xf32>
    %488 = vector.extract_strided_slice %477 {offsets = [0, 64], sizes = [8, 32], strides = [1, 1]} : vector<8x96xf32> to vector<8x32xf32>
    %489 = vector.extract_strided_slice %473 {offsets = [0, 64], sizes = [8, 32], strides = [1, 1]} : vector<8x96xf32> to vector<8x32xf32>
    %490 = arith.addf %489, %6 : vector<8x32xf32>
    %491 = arith.mulf %486, %490 : vector<8x32xf32>
    %492 = arith.addf %488, %491 : vector<8x32xf32>
    %493 = math.tanh %492 : vector<8x32xf32>
    %494 = arith.subf %467, %493 : vector<8x32xf32>
    %495 = arith.mulf %487, %494 : vector<8x32xf32>
    %496 = arith.addf %493, %495 : vector<8x32xf32>
    %497 = arith.index_cast %c16_i32 : i32 to index
    %c0_106 = arith.constant 0 : index
    %c0_107 = arith.constant 0 : index
    %498 = vector.load %arg5[%497, %c0_106, %c0_107] : memref<20x8x32xf32, #tpu.memory_space<vmem>>, vector<1x8x32xf32>
    %499 = vector.shape_cast %498 : vector<1x8x32xf32> to vector<8x32xf32>
    %500 = vector.shape_cast %496 : vector<8x32xf32> to vector<1x8x32xf32>
    tpu.vector_store %arg5[%497, %c0_106, %c0_107], %500 {strides = array<i32>} : memref<20x8x32xf32, #tpu.memory_space<vmem>>, vector<1x8x32xf32>,
    %c17_i32 = arith.constant 17 : i32
    %501 = arith.truncf %496 : vector<8x32xf32> to vector<8x32xbf16>
    %cst_108 = arith.constant dense<0.000000e+00> : vector<8x96xf32>
    %502 = tpu.matmul %501, %3, %cst_108 {dimension_numbers = #tpu.dot_dimension_numbers<[1], [0], [0], [1], [0, 0, 1, 1], [], []>} : vector<8x32xbf16>, vector<32x96xbf16>, vector<8x96xf32> -> vector<8x96xf32>
    %503 = arith.index_cast %c17_i32 : i32 to index
    %c0_109 = arith.constant 0 : index
    %c0_110 = arith.constant 0 : index
    %504 = vector.load %arg2[%503, %c0_109, %c0_110] : memref<20x8x96xbf16, #tpu.memory_space<vmem>>, vector<1x8x96xbf16>
    %505 = vector.shape_cast %504 : vector<1x8x96xbf16> to vector<8x96xbf16>
    %506 = arith.extf %505 : vector<8x96xbf16> to vector<8x96xf32>
    %507 = vector.extract_strided_slice %506 {offsets = [0, 0], sizes = [8, 64], strides = [1, 1]} : vector<8x96xf32> to vector<8x64xf32>
    %508 = vector.extract_strided_slice %502 {offsets = [0, 0], sizes = [8, 64], strides = [1, 1]} : vector<8x96xf32> to vector<8x64xf32>
    %509 = arith.addf %507, %508 : vector<8x64xf32>
    %510 = arith.negf %509 : vector<8x64xf32>
    %511 = math.exp %510 : vector<8x64xf32>
    %cst_111 = arith.constant 1.000000e+00 : f32
    %512 = vector.broadcast %cst_111 : f32 to vector<8x64xf32>
    %513 = arith.addf %512, %511 : vector<8x64xf32>
    %514 = arith.divf %512, %513 : vector<8x64xf32>
    %515 = vector.extract_strided_slice %514 {offsets = [0, 0], sizes = [8, 32], strides = [1, 1]} : vector<8x64xf32> to vector<8x32xf32>
    %516 = vector.extract_strided_slice %514 {offsets = [0, 32], sizes = [8, 32], strides = [1, 1]} : vector<8x64xf32> to vector<8x32xf32>
    %517 = vector.extract_strided_slice %506 {offsets = [0, 64], sizes = [8, 32], strides = [1, 1]} : vector<8x96xf32> to vector<8x32xf32>
    %518 = vector.extract_strided_slice %502 {offsets = [0, 64], sizes = [8, 32], strides = [1, 1]} : vector<8x96xf32> to vector<8x32xf32>
    %519 = arith.addf %518, %6 : vector<8x32xf32>
    %520 = arith.mulf %515, %519 : vector<8x32xf32>
    %521 = arith.addf %517, %520 : vector<8x32xf32>
    %522 = math.tanh %521 : vector<8x32xf32>
    %523 = arith.subf %496, %522 : vector<8x32xf32>
    %524 = arith.mulf %516, %523 : vector<8x32xf32>
    %525 = arith.addf %522, %524 : vector<8x32xf32>
    %526 = arith.index_cast %c17_i32 : i32 to index
    %c0_112 = arith.constant 0 : index
    %c0_113 = arith.constant 0 : index
    %527 = vector.load %arg5[%526, %c0_112, %c0_113] : memref<20x8x32xf32, #tpu.memory_space<vmem>>, vector<1x8x32xf32>
    %528 = vector.shape_cast %527 : vector<1x8x32xf32> to vector<8x32xf32>
    %529 = vector.shape_cast %525 : vector<8x32xf32> to vector<1x8x32xf32>
    tpu.vector_store %arg5[%526, %c0_112, %c0_113], %529 {strides = array<i32>} : memref<20x8x32xf32, #tpu.memory_space<vmem>>, vector<1x8x32xf32>,
    %c18_i32 = arith.constant 18 : i32
    %530 = arith.truncf %525 : vector<8x32xf32> to vector<8x32xbf16>
    %cst_114 = arith.constant dense<0.000000e+00> : vector<8x96xf32>
    %531 = tpu.matmul %530, %3, %cst_114 {dimension_numbers = #tpu.dot_dimension_numbers<[1], [0], [0], [1], [0, 0, 1, 1], [], []>} : vector<8x32xbf16>, vector<32x96xbf16>, vector<8x96xf32> -> vector<8x96xf32>
    %532 = arith.index_cast %c18_i32 : i32 to index
    %c0_115 = arith.constant 0 : index
    %c0_116 = arith.constant 0 : index
    %533 = vector.load %arg2[%532, %c0_115, %c0_116] : memref<20x8x96xbf16, #tpu.memory_space<vmem>>, vector<1x8x96xbf16>
    %534 = vector.shape_cast %533 : vector<1x8x96xbf16> to vector<8x96xbf16>
    %535 = arith.extf %534 : vector<8x96xbf16> to vector<8x96xf32>
    %536 = vector.extract_strided_slice %535 {offsets = [0, 0], sizes = [8, 64], strides = [1, 1]} : vector<8x96xf32> to vector<8x64xf32>
    %537 = vector.extract_strided_slice %531 {offsets = [0, 0], sizes = [8, 64], strides = [1, 1]} : vector<8x96xf32> to vector<8x64xf32>
    %538 = arith.addf %536, %537 : vector<8x64xf32>
    %539 = arith.negf %538 : vector<8x64xf32>
    %540 = math.exp %539 : vector<8x64xf32>
    %cst_117 = arith.constant 1.000000e+00 : f32
    %541 = vector.broadcast %cst_117 : f32 to vector<8x64xf32>
    %542 = arith.addf %541, %540 : vector<8x64xf32>
    %543 = arith.divf %541, %542 : vector<8x64xf32>
    %544 = vector.extract_strided_slice %543 {offsets = [0, 0], sizes = [8, 32], strides = [1, 1]} : vector<8x64xf32> to vector<8x32xf32>
    %545 = vector.extract_strided_slice %543 {offsets = [0, 32], sizes = [8, 32], strides = [1, 1]} : vector<8x64xf32> to vector<8x32xf32>
    %546 = vector.extract_strided_slice %535 {offsets = [0, 64], sizes = [8, 32], strides = [1, 1]} : vector<8x96xf32> to vector<8x32xf32>
    %547 = vector.extract_strided_slice %531 {offsets = [0, 64], sizes = [8, 32], strides = [1, 1]} : vector<8x96xf32> to vector<8x32xf32>
    %548 = arith.addf %547, %6 : vector<8x32xf32>
    %549 = arith.mulf %544, %548 : vector<8x32xf32>
    %550 = arith.addf %546, %549 : vector<8x32xf32>
    %551 = math.tanh %550 : vector<8x32xf32>
    %552 = arith.subf %525, %551 : vector<8x32xf32>
    %553 = arith.mulf %545, %552 : vector<8x32xf32>
    %554 = arith.addf %551, %553 : vector<8x32xf32>
    %555 = arith.index_cast %c18_i32 : i32 to index
    %c0_118 = arith.constant 0 : index
    %c0_119 = arith.constant 0 : index
    %556 = vector.load %arg5[%555, %c0_118, %c0_119] : memref<20x8x32xf32, #tpu.memory_space<vmem>>, vector<1x8x32xf32>
    %557 = vector.shape_cast %556 : vector<1x8x32xf32> to vector<8x32xf32>
    %558 = vector.shape_cast %554 : vector<8x32xf32> to vector<1x8x32xf32>
    tpu.vector_store %arg5[%555, %c0_118, %c0_119], %558 {strides = array<i32>} : memref<20x8x32xf32, #tpu.memory_space<vmem>>, vector<1x8x32xf32>,
    %c19_i32 = arith.constant 19 : i32
    %559 = arith.truncf %554 : vector<8x32xf32> to vector<8x32xbf16>
    %cst_120 = arith.constant dense<0.000000e+00> : vector<8x96xf32>
    %560 = tpu.matmul %559, %3, %cst_120 {dimension_numbers = #tpu.dot_dimension_numbers<[1], [0], [0], [1], [0, 0, 1, 1], [], []>} : vector<8x32xbf16>, vector<32x96xbf16>, vector<8x96xf32> -> vector<8x96xf32>
    %561 = arith.index_cast %c19_i32 : i32 to index
    %c0_121 = arith.constant 0 : index
    %c0_122 = arith.constant 0 : index
    %562 = vector.load %arg2[%561, %c0_121, %c0_122] : memref<20x8x96xbf16, #tpu.memory_space<vmem>>, vector<1x8x96xbf16>
    %563 = vector.shape_cast %562 : vector<1x8x96xbf16> to vector<8x96xbf16>
    %564 = arith.extf %563 : vector<8x96xbf16> to vector<8x96xf32>
    %565 = vector.extract_strided_slice %564 {offsets = [0, 0], sizes = [8, 64], strides = [1, 1]} : vector<8x96xf32> to vector<8x64xf32>
    %566 = vector.extract_strided_slice %560 {offsets = [0, 0], sizes = [8, 64], strides = [1, 1]} : vector<8x96xf32> to vector<8x64xf32>
    %567 = arith.addf %565, %566 : vector<8x64xf32>
    %568 = arith.negf %567 : vector<8x64xf32>
    %569 = math.exp %568 : vector<8x64xf32>
    %cst_123 = arith.constant 1.000000e+00 : f32
    %570 = vector.broadcast %cst_123 : f32 to vector<8x64xf32>
    %571 = arith.addf %570, %569 : vector<8x64xf32>
    %572 = arith.divf %570, %571 : vector<8x64xf32>
    %573 = vector.extract_strided_slice %572 {offsets = [0, 0], sizes = [8, 32], strides = [1, 1]} : vector<8x64xf32> to vector<8x32xf32>
    %574 = vector.extract_strided_slice %572 {offsets = [0, 32], sizes = [8, 32], strides = [1, 1]} : vector<8x64xf32> to vector<8x32xf32>
    %575 = vector.extract_strided_slice %564 {offsets = [0, 64], sizes = [8, 32], strides = [1, 1]} : vector<8x96xf32> to vector<8x32xf32>
    %576 = vector.extract_strided_slice %560 {offsets = [0, 64], sizes = [8, 32], strides = [1, 1]} : vector<8x96xf32> to vector<8x32xf32>
    %577 = arith.addf %576, %6 : vector<8x32xf32>
    %578 = arith.mulf %573, %577 : vector<8x32xf32>
    %579 = arith.addf %575, %578 : vector<8x32xf32>
    %580 = math.tanh %579 : vector<8x32xf32>
    %581 = arith.subf %554, %580 : vector<8x32xf32>
    %582 = arith.mulf %574, %581 : vector<8x32xf32>
    %583 = arith.addf %580, %582 : vector<8x32xf32>
    %584 = arith.index_cast %c19_i32 : i32 to index
    %c0_124 = arith.constant 0 : index
    %c0_125 = arith.constant 0 : index
    %585 = vector.load %arg5[%584, %c0_124, %c0_125] : memref<20x8x32xf32, #tpu.memory_space<vmem>>, vector<1x8x32xf32>
    %586 = vector.shape_cast %585 : vector<1x8x32xf32> to vector<8x32xf32>
    %587 = vector.shape_cast %583 : vector<8x32xf32> to vector<1x8x32xf32>
    tpu.vector_store %arg5[%584, %c0_124, %c0_125], %587 {strides = array<i32>} : memref<20x8x32xf32, #tpu.memory_space<vmem>>, vector<1x8x32xf32>,
    %c20_i32 = arith.constant 20 : i32
    %c0_126 = arith.constant 0 : index
    %c0_127 = arith.constant 0 : index
    %588 = vector.load %arg6[%c0_126, %c0_127] : memref<8x32xf32, #tpu.memory_space<vmem>>, vector<8x32xf32>
    tpu.vector_store %arg6[%c0_126, %c0_127], %583 {strides = array<i32>} : memref<8x32xf32, #tpu.memory_space<vmem>>, vector<8x32xf32>,
    return
  }
  func.func @transform_0(%arg0: i32, %arg1: i32) -> (i32, i32, i32) {
    %c0_i32 = arith.constant 0 : i32
    %c0_i32_0 = arith.constant 0 : i32
    return %arg1, %arg0, %c0_i32 : i32, i32, i32
  }
  func.func @transform_1(%arg0: i32, %arg1: i32) -> (i32, i32) {
    %c0_i32 = arith.constant 0 : i32
    %c0_i32_0 = arith.constant 0 : i32
    %c0_i32_1 = arith.constant 0 : i32
    return %c0_i32, %c0_i32_0 : i32, i32
  }
  func.func @transform_2(%arg0: i32, %arg1: i32) -> (i32, i32) {
    %c0_i32 = arith.constant 0 : i32
    %c0_i32_0 = arith.constant 0 : i32
    %c0_i32_1 = arith.constant 0 : i32
    return %c0_i32, %c0_i32_0 : i32, i32
  }
  func.func @transform_3(%arg0: i32, %arg1: i32) -> (i32, i32, i32) {
    %c0_i32 = arith.constant 0 : i32
    %c0_i32_0 = arith.constant 0 : i32
    return %arg1, %arg0, %c0_i32 : i32, i32, i32
  }
}

</mosaic_0001>

<llo_original>
// kernel: pisa_forward.1
$region0: #{pisa_forward.1}
  #allocation0 [shape = 'u32[]', space=smem, size = 0x4, offset = 0x4, fixed_abs, tag = 'smem constant byte address 0x4 - core index']
  #allocation1 [shape = 'u32[72,128]{1,0:T(1,128)}', space=vmem, size = 0x9000, scoped, tag = 'internal scratch']
  #allocation2 [shape = 'f32[8,32]{1,0:T(8,128)}', space=vmem, size = 0x1000, scoped, tag = 'scratch operand']
  %s0 = inlined_call_operand.vmem [shape: bf16[20,8,96], index: 0, kind: input, shape index: {}]
  %s1 = inlined_call_operand.vmem [shape: bf16[32,96], index: 1, kind: input, shape index: {}]
  %s2 = inlined_call_operand.vmem [shape: f32[1,32], index: 2, kind: input, shape index: {}]
  %s3 = inlined_call_operand.hbm [shape: f32[20,8,32], index: 3, kind: output, shape index: {}]
  %s4 = sld [smem:[#allocation0]]
  $region26: #{pisa_forward.1} parent=0
    _
  %s6 = ssub.s32 1, %s4
  %s7 = scalar_select 0, %s6, %s4
  $region1: #{pisa_forward.1} parent=0
    #allocation3 [shape = 'u8[81920]{0}', space=vmem, size = 0x14000, scoped, tag = 'output window, operand 0, single buffered']
    #allocation4 [shape = 's32[1]{0}', space=sflag, size = 0x4, scoped, tag = 'scoped memory for pisa_forward.1']
    %8 = vsyncpa [#allocation4], 0
    // Predicated region
    $region2: #{pisa_forward.1} parent=1 // pred_check
      _
    $region3: #{pisa_forward.1} parent=1 // pred_check_branch
      %10 = sbr.rel (0) target = $region5
    $region4: #{pisa_forward.1} parent=1 // pred_region
      _
    $region5: #{pisa_forward.1} parent=1 // pred_fallthru
      _
    // Predicated region
    $region6: #{pisa_forward.1} parent=1 // pred_check
      _
    $region7: #{pisa_forward.1} parent=1 // pred_check_branch
      %12 = sbr.rel (0) target = $region9
    $region8: #{pisa_forward.1} parent=1 // pred_region
      _
    $region9: #{pisa_forward.1} parent=1 // pred_fallthru
      _
    // Predicated region
    $region10: #{pisa_forward.1} parent=1 // pred_check
      _
    $region11: #{pisa_forward.1} parent=1 // pred_check_branch
      %14 = sbr.rel (0) target = $region13
    $region12: #{pisa_forward.1} parent=1 // pred_region
      _
    $region13: #{pisa_forward.1} parent=1 // pred_fallthru
      _
    %p16 = scmp.eq.s32.totalorder 0, 0
    // Predicated region
    $region14: #{pisa_forward.1} parent=1 // pred_check
      %p17 = pneg %p16
    $region15: #{pisa_forward.1} parent=1 // pred_check_branch
      %19 = sbr.rel (%p17) target = $region17
    $region16: #{pisa_forward.1} parent=1 // pred_region
      %vm20 = vcmask 261120
      %21 = vst.msk [vmem:[#allocation2] sm:$0xff] %vm20, 0.0
    $region17: #{pisa_forward.1} parent=1 // pred_fallthru
      _
    %v22 = vld [vmem:[%s1] sm:$0xf]
    %v23 = vld [vmem:[%s1 + $0x4] sm:$0xf]
    %v24 = vld [vmem:[%s1 + $0x8] sm:$0xf]
    %v25 = vld [vmem:[%s1 + $0xc] sm:$0xf]
    %v26 = vld [vmem:[%s2] sm:$0x1]
    %v28 = vperm.slane %v26, 0
    %v29 = vld [vmem:[#allocation2] sm:$0xff]
    %v30 = vpack.c.bf16 %v29, %v29
    %v35 = vunpack.c.l.b16 %v22
    %v36 = vunpack.c.l.b16 %v23
    %v37 = vunpack.c.l.b16 %v24
    %v38 = vunpack.c.l.b16 %v25
    %v39 = vpack.c.b16 %v36, %v35
    %v40 = vpack.c.b16 %v38, %v37
    %vm43 = vcmask 261120
    %v45 = vsel %vm43, %v30, 0
    %47 = vmatpush.bf16.msra.mxu0 0
    %48 = vmatpush.bf16.msra.mxu0 0
    %49 = vmatpush.bf16.msra.mxu0 0
    %50 = vmatpush.bf16.msra.mxu0 0
    %51 = vmatpush.bf16.msra.mxu0 0
    %52 = vmatpush.bf16.msra.mxu0 0
    %53 = vmatpush.bf16.msra.mxu0 %v40
    %54 = vmatpush.bf16.msra.mxu0 %v39
    %55 = vmatmul.bf16.gmra.mxu0 %v45
    %v56 = vpop.f32.mrf.mxu0
    %v57 = vadd.f32 0.0, %v56
    %v58 = vpop.f32.mrf.mxu0
    %59 = vdwg.mxu0
    %v60 = vld [vmem:[%s0] sm:$0xf]
    %v61 = vunpack.c.l.bf16 %v60
    %v62 = vadd.f32 %v61, %v57
    %v63 = vxor.u32 %v62, 2147483648
    %v64 = vmul.f32 %v63, 1.442695
    %v65 = vpow.pop %v64
    %v66 = vadd.f32 %v65, 1.0
    %v67 = vrcp.pop %v66
    %v68 = vmul.f32 %v66, %v67
    %v69 = vsub.f32 1.0, %v68
    %v70 = vmul.f32 %v67, %v69
    %v71 = vadd.f32 %v67, %v70
    %vm72 = vweird.f32 %v66
    %vm73 = vweird.f32 %v67
    %vm74 = vmor %vm72, %vm73
    %v75 = vsel %vm74, %v67, %v71
    %v76 = vand.u32 2147483647, %v66
    %vm77 = vcmp.eq.f32.partialorder %v76, 8.507059e+37
    %v78 = vand.u32 %v66, 2147483648
    %v79 = vor.u32 1.1754944e-38, %v78
    %v80 = vsel %vm77, %v79, %v75
    %v81 = vmul.f32 1.0, %v80
    %82 = vrot.lane.b32.xlu0 %v28, 64
    %v83 = vpop.permute.xlu0 %82
    %v85 = vadd.f32 %v57, %v83
    %87 = vrot.lane.b32.xlu0 %v85, 64
    %v88 = vpop.permute.xlu0 %87
    %v90 = vmul.f32 %v81, %v88
    %92 = vrot.lane.b32.xlu0 %v90, 64
    %v93 = vpop.permute.xlu0 %92
    %v95 = vadd.f32 %v61, %v93
    %v96 = vtanh.pop %v95
    %98 = vrot.lane.b32.xlu0 %v96, 64
    %v99 = vpop.permute.xlu0 %98
    %v101 = vsub.f32 %v29, %v99
    %103 = vrot.lane.b32.xlu0 %v101, 32
    %v104 = vpop.permute.xlu0 %103
    %v106 = vmul.f32 %v81, %v104
    %108 = vrot.lane.b32.xlu0 %v106, 32
    %v109 = vpop.permute.xlu0 %108
    %v111 = vadd.f32 %v96, %v109
    %113 = vrot.lane.b32.xlu0 %v111, 64
    %v114 = vpop.permute.xlu0 %113
    %116 = vst.msk [vmem:[#allocation3] sm:$0xff] %vm43, %v114
    %v117 = vpack.c.bf16 %v111, %v111
    %119 = vrot.lane.b32.xlu0 %v117, 64
    %v120 = vpop.permute.xlu0 %119
    %v122 = vsel %vm43, %v120, 0
    %124 = vmatpush.bf16.msra.mxu0 0
    %125 = vmatpush.bf16.msra.mxu0 0
    %126 = vmatpush.bf16.msra.mxu0 0
    %127 = vmatpush.bf16.msra.mxu0 0
    %128 = vmatpush.bf16.msra.mxu0 0
    %129 = vmatpush.bf16.msra.mxu0 0
    %130 = vmatpush.bf16.msra.mxu0 %v40
    %131 = vmatpush.bf16.msra.mxu0 %v39
    %132 = vmatmul.bf16.gmra.mxu0 %v122
    %v133 = vpop.f32.mrf.mxu0
    %v134 = vadd.f32 0.0, %v133
    %v135 = vpop.f32.mrf.mxu0
    %136 = vdwg.mxu0
    %s137 = scalar_lea.vmem %s0, 4
    %v138 = vld [vmem:[%s137] sm:$0xf]
    %v139 = vunpack.c.l.bf16 %v138
    %v140 = vadd.f32 %v139, %v134
    %v141 = vxor.u32 %v140, 2147483648
    %v142 = vmul.f32 %v141, 1.442695
    %v143 = vpow.pop %v142
    %v144 = vadd.f32 %v143, 1.0
    %v145 = vrcp.pop %v144
    %v146 = vmul.f32 %v144, %v145
    %v147 = vsub.f32 1.0, %v146
    %v148 = vmul.f32 %v145, %v147
    %v149 = vadd.f32 %v145, %v148
    %vm150 = vweird.f32 %v144
    %vm151 = vweird.f32 %v145
    %vm152 = vmor %vm150, %vm151
    %v153 = vsel %vm152, %v145, %v149
    %v154 = vand.u32 2147483647, %v144
    %vm155 = vcmp.eq.f32.partialorder %v154, 8.507059e+37
    %v156 = vand.u32 %v144, 2147483648
    %v157 = vor.u32 1.1754944e-38, %v156
    %v158 = vsel %vm155, %v157, %v153
    %v159 = vmul.f32 1.0, %v158
    %v160 = vadd.f32 %v134, %v83
    %162 = vrot.lane.b32.xlu0 %v160, 64
    %v163 = vpop.permute.xlu0 %162
    %v165 = vmul.f32 %v159, %v163
    %167 = vrot.lane.b32.xlu0 %v165, 64
    %v168 = vpop.permute.xlu0 %167
    %v170 = vadd.f32 %v139, %v168
    %v171 = vtanh.pop %v170
    %v172 = vsub.f32 %v111, %v171
    %174 = vrot.lane.b32.xlu0 %v172, 96
    %v175 = vpop.permute.xlu0 %174
    %v177 = vmul.f32 %v159, %v175
    %179 = vrot.lane.b32.xlu0 %v177, 32
    %v180 = vpop.permute.xlu0 %179
    %v182 = vadd.f32 %v171, %v180
    %184 = vrot.lane.b32.xlu0 %v182, 64
    %v185 = vpop.permute.xlu0 %184
    %s187 = scalar_lea.vmem [#allocation3], 8
    %188 = vst.msk [vmem:[%s187] sm:$0xff] %vm43, %v185
    %v189 = vpack.c.bf16 %v182, %v182
    %191 = vrot.lane.b32.xlu0 %v189, 64
    %v192 = vpop.permute.xlu0 %191
    %v194 = vsel %vm43, %v192, 0
    %196 = vmatpush.bf16.msra.mxu0 0
    %197 = vmatpush.bf16.msra.mxu0 0
    %198 = vmatpush.bf16.msra.mxu0 0
    %199 = vmatpush.bf16.msra.mxu0 0
    %200 = vmatpush.bf16.msra.mxu0 0
    %201 = vmatpush.bf16.msra.mxu0 0
    %202 = vmatpush.bf16.msra.mxu0 %v40
    %203 = vmatpush.bf16.msra.mxu0 %v39
    %204 = vmatmul.bf16.gmra.mxu0 %v194
    %v205 = vpop.f32.mrf.mxu0
    %v206 = vadd.f32 0.0, %v205
    %v207 = vpop.f32.mrf.mxu0
    %208 = vdwg.mxu0
    %s209 = scalar_lea.vmem %s0, 8
    %v210 = vld [vmem:[%s209] sm:$0xf]
    %v211 = vunpack.c.l.bf16 %v210
    %v212 = vadd.f32 %v211, %v206
    %v213 = vxor.u32 %v212, 2147483648
    %v214 = vmul.f32 %v213, 1.442695
    %v215 = vpow.pop %v214
    %v216 = vadd.f32 %v215, 1.0
    %v217 = vrcp.pop %v216
    %v218 = vmul.f32 %v216, %v217
    %v219 = vsub.f32 1.0, %v218
    %v220 = vmul.f32 %v217, %v219
    %v221 = vadd.f32 %v217, %v220
    %vm222 = vweird.f32 %v216
    %vm223 = vweird.f32 %v217
    %vm224 = vmor %vm222, %vm223
    %v225 = vsel %vm224, %v217, %v221
    %v226 = vand.u32 2147483647, %v216
    %vm227 = vcmp.eq.f32.partialorder %v226, 8.507059e+37
    %v228 = vand.u32 %v216, 2147483648
    %v229 = vor.u32 1.1754944e-38, %v228
    %v230 = vsel %vm227, %v229, %v225
    %v231 = vmul.f32 1.0, %v230
    %v232 = vadd.f32 %v206, %v83
    %234 = vrot.lane.b32.xlu0 %v232, 64
    %v235 = vpop.permute.xlu0 %234
    %v237 = vmul.f32 %v231, %v235
    %239 = vrot.lane.b32.xlu0 %v237, 64
    %v240 = vpop.permute.xlu0 %239
    %v242 = vadd.f32 %v211, %v240
    %v243 = vtanh.pop %v242
    %v244 = vsub.f32 %v182, %v243
    %246 = vrot.lane.b32.xlu0 %v244, 96
    %v247 = vpop.permute.xlu0 %246
    %v249 = vmul.f32 %v231, %v247
    %251 = vrot.lane.b32.xlu0 %v249, 32
    %v252 = vpop.permute.xlu0 %251
    %v254 = vadd.f32 %v243, %v252
    %256 = vrot.lane.b32.xlu0 %v254, 64
    %v257 = vpop.permute.xlu0 %256
    %s259 = scalar_lea.vmem [#allocation3], 16
    %260 = vst.msk [vmem:[%s259] sm:$0xff] %vm43, %v257
    %v261 = vpack.c.bf16 %v254, %v254
    %263 = vrot.lane.b32.xlu0 %v261, 64
    %v264 = vpop.permute.xlu0 %263
    %v266 = vsel %vm43, %v264, 0
    %268 = vmatpush.bf16.msra.mxu0 0
    %269 = vmatpush.bf16.msra.mxu0 0
    %270 = vmatpush.bf16.msra.mxu0 0
    %271 = vmatpush.bf16.msra.mxu0 0
    %272 = vmatpush.bf16.msra.mxu0 0
    %273 = vmatpush.bf16.msra.mxu0 0
    %274 = vmatpush.bf16.msra.mxu0 %v40
    %275 = vmatpush.bf16.msra.mxu0 %v39
    %276 = vmatmul.bf16.gmra.mxu0 %v266
    %v277 = vpop.f32.mrf.mxu0
    %v278 = vadd.f32 0.0, %v277
    %v279 = vpop.f32.mrf.mxu0
    %280 = vdwg.mxu0
    %s281 = scalar_lea.vmem %s0, 12
    %v282 = vld [vmem:[%s281] sm:$0xf]
    %v283 = vunpack.c.l.bf16 %v282
    %v284 = vadd.f32 %v283, %v278
    %v285 = vxor.u32 %v284, 2147483648
    %v286 = vmul.f32 %v285, 1.442695
    %v287 = vpow.pop %v286
    %v288 = vadd.f32 %v287, 1.0
    %v289 = vrcp.pop %v288
    %v290 = vmul.f32 %v288, %v289
    %v291 = vsub.f32 1.0, %v290
    %v292 = vmul.f32 %v289, %v291
    %v293 = vadd.f32 %v289, %v292
    %vm294 = vweird.f32 %v288
    %vm295 = vweird.f32 %v289
    %vm296 = vmor %vm294, %vm295
    %v297 = vsel %vm296, %v289, %v293
    %v298 = vand.u32 2147483647, %v288
    %vm299 = vcmp.eq.f32.partialorder %v298, 8.507059e+37
    %v300 = vand.u32 %v288, 2147483648
    %v301 = vor.u32 1.1754944e-38, %v300
    %v302 = vsel %vm299, %v301, %v297
    %v303 = vmul.f32 1.0, %v302
    %v304 = vadd.f32 %v278, %v83
    %306 = vrot.lane.b32.xlu0 %v304, 64
    %v307 = vpop.permute.xlu0 %306
    %v309 = vmul.f32 %v303, %v307
    %311 = vrot.lane.b32.xlu0 %v309, 64
    %v312 = vpop.permute.xlu0 %311
    %v314 = vadd.f32 %v283, %v312
    %v315 = vtanh.pop %v314
    %v316 = vsub.f32 %v254, %v315
    %318 = vrot.lane.b32.xlu0 %v316, 96
    %v319 = vpop.permute.xlu0 %318
    %v321 = vmul.f32 %v303, %v319
    %323 = vrot.lane.b32.xlu0 %v321, 32
    %v324 = vpop.permute.xlu0 %323
    %v326 = vadd.f32 %v315, %v324
    %328 = vrot.lane.b32.xlu0 %v326, 64
    %v329 = vpop.permute.xlu0 %328
    %s331 = scalar_lea.vmem [#allocation3], 24
    %332 = vst.msk [vmem:[%s331] sm:$0xff] %vm43, %v329
    %v333 = vpack.c.bf16 %v326, %v326
    %335 = vrot.lane.b32.xlu0 %v333, 64
    %v336 = vpop.permute.xlu0 %335
    %v338 = vsel %vm43, %v336, 0
    %340 = vmatpush.bf16.msra.mxu0 0
    %341 = vmatpush.bf16.msra.mxu0 0
    %342 = vmatpush.bf16.msra.mxu0 0
    %343 = vmatpush.bf16.msra.mxu0 0
    %344 = vmatpush.bf16.msra.mxu0 0
    %345 = vmatpush.bf16.msra.mxu0 0
    %346 = vmatpush.bf16.msra.mxu0 %v40
    %347 = vmatpush.bf16.msra.mxu0 %v39
    %348 = vmatmul.bf16.gmra.mxu0 %v338
    %v349 = vpop.f32.mrf.mxu0
    %v350 = vadd.f32 0.0, %v349
    %v351 = vpop.f32.mrf.mxu0
    %352 = vdwg.mxu0
    %s353 = scalar_lea.vmem %s0, 16
    %v354 = vld [vmem:[%s353] sm:$0xf]
    %v355 = vunpack.c.l.bf16 %v354
    %v356 = vadd.f32 %v355, %v350
    %v357 = vxor.u32 %v356, 2147483648
    %v358 = vmul.f32 %v357, 1.442695
    %v359 = vpow.pop %v358
    %v360 = vadd.f32 %v359, 1.0
    %v361 = vrcp.pop %v360
    %v362 = vmul.f32 %v360, %v361
    %v363 = vsub.f32 1.0, %v362
    %v364 = vmul.f32 %v361, %v363
    %v365 = vadd.f32 %v361, %v364
    %vm366 = vweird.f32 %v360
    %vm367 = vweird.f32 %v361
    %vm368 = vmor %vm366, %vm367
    %v369 = vsel %vm368, %v361, %v365
    %v370 = vand.u32 2147483647, %v360
    %vm371 = vcmp.eq.f32.partialorder %v370, 8.507059e+37
    %v372 = vand.u32 %v360, 2147483648
    %v373 = vor.u32 1.1754944e-38, %v372
    %v374 = vsel %vm371, %v373, %v369
    %v375 = vmul.f32 1.0, %v374
    %v376 = vadd.f32 %v350, %v83
    %378 = vrot.lane.b32.xlu0 %v376, 64
    %v379 = vpop.permute.xlu0 %378
    %v381 = vmul.f32 %v375, %v379
    %383 = vrot.lane.b32.xlu0 %v381, 64
    %v384 = vpop.permute.xlu0 %383
    %v386 = vadd.f32 %v355, %v384
    %v387 = vtanh.pop %v386
    %v388 = vsub.f32 %v326, %v387
    %390 = vrot.lane.b32.xlu0 %v388, 96
    %v391 = vpop.permute.xlu0 %390
    %v393 = vmul.f32 %v375, %v391
    %395 = vrot.lane.b32.xlu0 %v393, 32
    %v396 = vpop.permute.xlu0 %395
    %v398 = vadd.f32 %v387, %v396
    %400 = vrot.lane.b32.xlu0 %v398, 64
    %v401 = vpop.permute.xlu0 %400
    %s403 = scalar_lea.vmem [#allocation3], 32
    %404 = vst.msk [vmem:[%s403] sm:$0xff] %vm43, %v401
    %v405 = vpack.c.bf16 %v398, %v398
    %407 = vrot.lane.b32.xlu0 %v405, 64
    %v408 = vpop.permute.xlu0 %407
    %v410 = vsel %vm43, %v408, 0
    %412 = vmatpush.bf16.msra.mxu0 0
    %413 = vmatpush.bf16.msra.mxu0 0
    %414 = vmatpush.bf16.msra.mxu0 0
    %415 = vmatpush.bf16.msra.mxu0 0
    %416 = vmatpush.bf16.msra.mxu0 0
    %417 = vmatpush.bf16.msra.mxu0 0
    %418 = vmatpush.bf16.msra.mxu0 %v40
    %419 = vmatpush.bf16.msra.mxu0 %v39
    %420 = vmatmul.bf16.gmra.mxu0 %v410
    %v421 = vpop.f32.mrf.mxu0
    %v422 = vadd.f32 0.0, %v421
    %v423 = vpop.f32.mrf.mxu0
    %424 = vdwg.mxu0
    %s425 = scalar_lea.vmem %s0, 20
    %v426 = vld [vmem:[%s425] sm:$0xf]
    %v427 = vunpack.c.l.bf16 %v426
    %v428 = vadd.f32 %v427, %v422
    %v429 = vxor.u32 %v428, 2147483648
    %v430 = vmul.f32 %v429, 1.442695
    %v431 = vpow.pop %v430
    %v432 = vadd.f32 %v431, 1.0
    %v433 = vrcp.pop %v432
    %v434 = vmul.f32 %v432, %v433
    %v435 = vsub.f32 1.0, %v434
    %v436 = vmul.f32 %v433, %v435
    %v437 = vadd.f32 %v433, %v436
    %vm438 = vweird.f32 %v432
    %vm439 = vweird.f32 %v433
    %vm440 = vmor %vm438, %vm439
    %v441 = vsel %vm440, %v433, %v437
    %v442 = vand.u32 2147483647, %v432
    %vm443 = vcmp.eq.f32.partialorder %v442, 8.507059e+37
    %v444 = vand.u32 %v432, 2147483648
    %v445 = vor.u32 1.1754944e-38, %v444
    %v446 = vsel %vm443, %v445, %v441
    %v447 = vmul.f32 1.0, %v446
    %v448 = vadd.f32 %v422, %v83
    %450 = vrot.lane.b32.xlu0 %v448, 64
    %v451 = vpop.permute.xlu0 %450
    %v453 = vmul.f32 %v447, %v451
    %455 = vrot.lane.b32.xlu0 %v453, 64
    %v456 = vpop.permute.xlu0 %455
    %v458 = vadd.f32 %v427, %v456
    %v459 = vtanh.pop %v458
    %v460 = vsub.f32 %v398, %v459
    %462 = vrot.lane.b32.xlu0 %v460, 96
    %v463 = vpop.permute.xlu0 %462
    %v465 = vmul.f32 %v447, %v463
    %467 = vrot.lane.b32.xlu0 %v465, 32
    %v468 = vpop.permute.xlu0 %467
    %v470 = vadd.f32 %v459, %v468
    %472 = vrot.lane.b32.xlu0 %v470, 64
    %v473 = vpop.permute.xlu0 %472
    %s475 = scalar_lea.vmem [#allocation3], 40
    %476 = vst.msk [vmem:[%s475] sm:$0xff] %vm43, %v473
    %v477 = vpack.c.bf16 %v470, %v470
    %479 = vrot.lane.b32.xlu0 %v477, 64
    %v480 = vpop.permute.xlu0 %479
    %v482 = vsel %vm43, %v480, 0
    %484 = vmatpush.bf16.msra.mxu0 0
    %485 = vmatpush.bf16.msra.mxu0 0
    %486 = vmatpush.bf16.msra.mxu0 0
    %487 = vmatpush.bf16.msra.mxu0 0
    %488 = vmatpush.bf16.msra.mxu0 0
    %489 = vmatpush.bf16.msra.mxu0 0
    %490 = vmatpush.bf16.msra.mxu0 %v40
    %491 = vmatpush.bf16.msra.mxu0 %v39
    %492 = vmatmul.bf16.gmra.mxu0 %v482
    %v493 = vpop.f32.mrf.mxu0
    %v494 = vadd.f32 0.0, %v493
    %v495 = vpop.f32.mrf.mxu0
    %496 = vdwg.mxu0
    %s497 = scalar_lea.vmem %s0, 24
    %v498 = vld [vmem:[%s497] sm:$0xf]
    %v499 = vunpack.c.l.bf16 %v498
    %v500 = vadd.f32 %v499, %v494
    %v501 = vxor.u32 %v500, 2147483648
    %v502 = vmul.f32 %v501, 1.442695
    %v503 = vpow.pop %v502
    %v504 = vadd.f32 %v503, 1.0
    %v505 = vrcp.pop %v504
    %v506 = vmul.f32 %v504, %v505
    %v507 = vsub.f32 1.0, %v506
    %v508 = vmul.f32 %v505, %v507
    %v509 = vadd.f32 %v505, %v508
    %vm510 = vweird.f32 %v504
    %vm511 = vweird.f32 %v505
    %vm512 = vmor %vm510, %vm511
    %v513 = vsel %vm512, %v505, %v509
    %v514 = vand.u32 2147483647, %v504
    %vm515 = vcmp.eq.f32.partialorder %v514, 8.507059e+37
    %v516 = vand.u32 %v504, 2147483648
    %v517 = vor.u32 1.1754944e-38, %v516
    %v518 = vsel %vm515, %v517, %v513
    %v519 = vmul.f32 1.0, %v518
    %v520 = vadd.f32 %v494, %v83
    %522 = vrot.lane.b32.xlu0 %v520, 64
    %v523 = vpop.permute.xlu0 %522
    %v525 = vmul.f32 %v519, %v523
    %527 = vrot.lane.b32.xlu0 %v525, 64
    %v528 = vpop.permute.xlu0 %527
    %v530 = vadd.f32 %v499, %v528
    %v531 = vtanh.pop %v530
    %v532 = vsub.f32 %v470, %v531
    %534 = vrot.lane.b32.xlu0 %v532, 96
    %v535 = vpop.permute.xlu0 %534
    %v537 = vmul.f32 %v519, %v535
    %539 = vrot.lane.b32.xlu0 %v537, 32
    %v540 = vpop.permute.xlu0 %539
    %v542 = vadd.f32 %v531, %v540
    %544 = vrot.lane.b32.xlu0 %v542, 64
    %v545 = vpop.permute.xlu0 %544
    %s547 = scalar_lea.vmem [#allocation3], 48
    %548 = vst.msk [vmem:[%s547] sm:$0xff] %vm43, %v545
    %v549 = vpack.c.bf16 %v542, %v542
    %551 = vrot.lane.b32.xlu0 %v549, 64
    %v552 = vpop.permute.xlu0 %551
    %v554 = vsel %vm43, %v552, 0
    %556 = vmatpush.bf16.msra.mxu0 0
    %557 = vmatpush.bf16.msra.mxu0 0
    %558 = vmatpush.bf16.msra.mxu0 0
    %559 = vmatpush.bf16.msra.mxu0 0
    %560 = vmatpush.bf16.msra.mxu0 0
    %561 = vmatpush.bf16.msra.mxu0 0
    %562 = vmatpush.bf16.msra.mxu0 %v40
    %563 = vmatpush.bf16.msra.mxu0 %v39
    %564 = vmatmul.bf16.gmra.mxu0 %v554
    %v565 = vpop.f32.mrf.mxu0
    %v566 = vadd.f32 0.0, %v565
    %v567 = vpop.f32.mrf.mxu0
    %568 = vdwg.mxu0
    %s569 = scalar_lea.vmem %s0, 28
    %v570 = vld [vmem:[%s569] sm:$0xf]
    %v571 = vunpack.c.l.bf16 %v570
    %v572 = vadd.f32 %v571, %v566
    %v573 = vxor.u32 %v572, 2147483648
    %v574 = vmul.f32 %v573, 1.442695
    %v575 = vpow.pop %v574
    %v576 = vadd.f32 %v575, 1.0
    %v577 = vrcp.pop %v576
    %v578 = vmul.f32 %v576, %v577
    %v579 = vsub.f32 1.0, %v578
    %v580 = vmul.f32 %v577, %v579
    %v581 = vadd.f32 %v577, %v580
    %vm582 = vweird.f32 %v576
    %vm583 = vweird.f32 %v577
    %vm584 = vmor %vm582, %vm583
    %v585 = vsel %vm584, %v577, %v581
    %v586 = vand.u32 2147483647, %v576
    %vm587 = vcmp.eq.f32.partialorder %v586, 8.507059e+37
    %v588 = vand.u32 %v576, 2147483648
    %v589 = vor.u32 1.1754944e-38, %v588
    %v590 = vsel %vm587, %v589, %v585
    %v591 = vmul.f32 1.0, %v590
    %v592 = vadd.f32 %v566, %v83
    %594 = vrot.lane.b32.xlu0 %v592, 64
    %v595 = vpop.permute.xlu0 %594
    %v597 = vmul.f32 %v591, %v595
    %599 = vrot.lane.b32.xlu0 %v597, 64
    %v600 = vpop.permute.xlu0 %599
    %v602 = vadd.f32 %v571, %v600
    %v603 = vtanh.pop %v602
    %v604 = vsub.f32 %v542, %v603
    %606 = vrot.lane.b32.xlu0 %v604, 96
    %v607 = vpop.permute.xlu0 %606
    %v609 = vmul.f32 %v591, %v607
    %611 = vrot.lane.b32.xlu0 %v609, 32
    %v612 = vpop.permute.xlu0 %611
    %v614 = vadd.f32 %v603, %v612
    %616 = vrot.lane.b32.xlu0 %v614, 64
    %v617 = vpop.permute.xlu0 %616
    %s619 = scalar_lea.vmem [#allocation3], 56
    %620 = vst.msk [vmem:[%s619] sm:$0xff] %vm43, %v617
    %v621 = vpack.c.bf16 %v614, %v614
    %623 = vrot.lane.b32.xlu0 %v621, 64
    %v624 = vpop.permute.xlu0 %623
    %v626 = vsel %vm43, %v624, 0
    %628 = vmatpush.bf16.msra.mxu0 0
    %629 = vmatpush.bf16.msra.mxu0 0
    %630 = vmatpush.bf16.msra.mxu0 0
    %631 = vmatpush.bf16.msra.mxu0 0
    %632 = vmatpush.bf16.msra.mxu0 0
    %633 = vmatpush.bf16.msra.mxu0 0
    %634 = vmatpush.bf16.msra.mxu0 %v40
    %635 = vmatpush.bf16.msra.mxu0 %v39
    %636 = vmatmul.bf16.gmra.mxu0 %v626
    %v637 = vpop.f32.mrf.mxu0
    %v638 = vadd.f32 0.0, %v637
    %v639 = vpop.f32.mrf.mxu0
    %640 = vdwg.mxu0
    %s641 = scalar_lea.vmem %s0, 32
    %v642 = vld [vmem:[%s641] sm:$0xf]
    %v643 = vunpack.c.l.bf16 %v642
    %v644 = vadd.f32 %v643, %v638
    %v645 = vxor.u32 %v644, 2147483648
    %v646 = vmul.f32 %v645, 1.442695
    %v647 = vpow.pop %v646
    %v648 = vadd.f32 %v647, 1.0
    %v649 = vrcp.pop %v648
    %v650 = vmul.f32 %v648, %v649
    %v651 = vsub.f32 1.0, %v650
    %v652 = vmul.f32 %v649, %v651
    %v653 = vadd.f32 %v649, %v652
    %vm654 = vweird.f32 %v648
    %vm655 = vweird.f32 %v649
    %vm656 = vmor %vm654, %vm655
    %v657 = vsel %vm656, %v649, %v653
    %v658 = vand.u32 2147483647, %v648
    %vm659 = vcmp.eq.f32.partialorder %v658, 8.507059e+37
    %v660 = vand.u32 %v648, 2147483648
    %v661 = vor.u32 1.1754944e-38, %v660
    %v662 = vsel %vm659, %v661, %v657
    %v663 = vmul.f32 1.0, %v662
    %v664 = vadd.f32 %v638, %v83
    %666 = vrot.lane.b32.xlu0 %v664, 64
    %v667 = vpop.permute.xlu0 %666
    %v669 = vmul.f32 %v663, %v667
    %671 = vrot.lane.b32.xlu0 %v669, 64
    %v672 = vpop.permute.xlu0 %671
    %v674 = vadd.f32 %v643, %v672
    %v675 = vtanh.pop %v674
    %v676 = vsub.f32 %v614, %v675
    %678 = vrot.lane.b32.xlu0 %v676, 96
    %v679 = vpop.permute.xlu0 %678
    %v681 = vmul.f32 %v663, %v679
    %683 = vrot.lane.b32.xlu0 %v681, 32
    %v684 = vpop.permute.xlu0 %683
    %v686 = vadd.f32 %v675, %v684
    %688 = vrot.lane.b32.xlu0 %v686, 64
    %v689 = vpop.permute.xlu0 %688
    %s691 = scalar_lea.vmem [#allocation3], 64
    %692 = vst.msk [vmem:[%s691] sm:$0xff] %vm43, %v689
    %v693 = vpack.c.bf16 %v686, %v686
    %695 = vrot.lane.b32.xlu0 %v693, 64
    %v696 = vpop.permute.xlu0 %695
    %v698 = vsel %vm43, %v696, 0
    %700 = vmatpush.bf16.msra.mxu0 0
    %701 = vmatpush.bf16.msra.mxu0 0
    %702 = vmatpush.bf16.msra.mxu0 0
    %703 = vmatpush.bf16.msra.mxu0 0
    %704 = vmatpush.bf16.msra.mxu0 0
    %705 = vmatpush.bf16.msra.mxu0 0
    %706 = vmatpush.bf16.msra.mxu0 %v40
    %707 = vmatpush.bf16.msra.mxu0 %v39
    %708 = vmatmul.bf16.gmra.mxu0 %v698
    %v709 = vpop.f32.mrf.mxu0
    %v710 = vadd.f32 0.0, %v709
    %v711 = vpop.f32.mrf.mxu0
    %712 = vdwg.mxu0
    %s713 = scalar_lea.vmem %s0, 36
    %v714 = vld [vmem:[%s713] sm:$0xf]
    %v715 = vunpack.c.l.bf16 %v714
    %v716 = vadd.f32 %v715, %v710
    %v717 = vxor.u32 %v716, 2147483648
    %v718 = vmul.f32 %v717, 1.442695
    %v719 = vpow.pop %v718
    %v720 = vadd.f32 %v719, 1.0
    %v721 = vrcp.pop %v720
    %v722 = vmul.f32 %v720, %v721
    %v723 = vsub.f32 1.0, %v722
    %v724 = vmul.f32 %v721, %v723
    %v725 = vadd.f32 %v721, %v724
    %vm726 = vweird.f32 %v720
    %vm727 = vweird.f32 %v721
    %vm728 = vmor %vm726, %vm727
    %v729 = vsel %vm728, %v721, %v725
    %v730 = vand.u32 2147483647, %v720
    %vm731 = vcmp.eq.f32.partialorder %v730, 8.507059e+37
    %v732 = vand.u32 %v720, 2147483648
    %v733 = vor.u32 1.1754944e-38, %v732
    %v734 = vsel %vm731, %v733, %v729
    %v735 = vmul.f32 1.0, %v734
    %v736 = vadd.f32 %v710, %v83
    %738 = vrot.lane.b32.xlu0 %v736, 64
    %v739 = vpop.permute.xlu0 %738
    %v741 = vmul.f32 %v735, %v739
    %743 = vrot.lane.b32.xlu0 %v741, 64
    %v744 = vpop.permute.xlu0 %743
    %v746 = vadd.f32 %v715, %v744
    %v747 = vtanh.pop %v746
    %v748 = vsub.f32 %v686, %v747
    %750 = vrot.lane.b32.xlu0 %v748, 96
    %v751 = vpop.permute.xlu0 %750
    %v753 = vmul.f32 %v735, %v751
    %755 = vrot.lane.b32.xlu0 %v753, 32
    %v756 = vpop.permute.xlu0 %755
    %v758 = vadd.f32 %v747, %v756
    %760 = vrot.lane.b32.xlu0 %v758, 64
    %v761 = vpop.permute.xlu0 %760
    %s763 = scalar_lea.vmem [#allocation3], 72
    %764 = vst.msk [vmem:[%s763] sm:$0xff] %vm43, %v761
    %v765 = vpack.c.bf16 %v758, %v758
    %767 = vrot.lane.b32.xlu0 %v765, 64
    %v768 = vpop.permute.xlu0 %767
    %v770 = vsel %vm43, %v768, 0
    %772 = vmatpush.bf16.msra.mxu0 0
    %773 = vmatpush.bf16.msra.mxu0 0
    %774 = vmatpush.bf16.msra.mxu0 0
    %775 = vmatpush.bf16.msra.mxu0 0
    %776 = vmatpush.bf16.msra.mxu0 0
    %777 = vmatpush.bf16.msra.mxu0 0
    %778 = vmatpush.bf16.msra.mxu0 %v40
    %779 = vmatpush.bf16.msra.mxu0 %v39
    %780 = vmatmul.bf16.gmra.mxu0 %v770
    %v781 = vpop.f32.mrf.mxu0
    %v782 = vadd.f32 0.0, %v781
    %v783 = vpop.f32.mrf.mxu0
    %784 = vdwg.mxu0
    %s785 = scalar_lea.vmem %s0, 40
    %v786 = vld [vmem:[%s785] sm:$0xf]
    %v787 = vunpack.c.l.bf16 %v786
    %v788 = vadd.f32 %v787, %v782
    %v789 = vxor.u32 %v788, 2147483648
    %v790 = vmul.f32 %v789, 1.442695
    %v791 = vpow.pop %v790
    %v792 = vadd.f32 %v791, 1.0
    %v793 = vrcp.pop %v792
    %v794 = vmul.f32 %v792, %v793
    %v795 = vsub.f32 1.0, %v794
    %v796 = vmul.f32 %v793, %v795
    %v797 = vadd.f32 %v793, %v796
    %vm798 = vweird.f32 %v792
    %vm799 = vweird.f32 %v793
    %vm800 = vmor %vm798, %vm799
    %v801 = vsel %vm800, %v793, %v797
    %v802 = vand.u32 2147483647, %v792
    %vm803 = vcmp.eq.f32.partialorder %v802, 8.507059e+37
    %v804 = vand.u32 %v792, 2147483648
    %v805 = vor.u32 1.1754944e-38, %v804
    %v806 = vsel %vm803, %v805, %v801
    %v807 = vmul.f32 1.0, %v806
    %v808 = vadd.f32 %v782, %v83
    %810 = vrot.lane.b32.xlu0 %v808, 64
    %v811 = vpop.permute.xlu0 %810
    %v813 = vmul.f32 %v807, %v811
    %815 = vrot.lane.b32.xlu0 %v813, 64
    %v816 = vpop.permute.xlu0 %815
    %v818 = vadd.f32 %v787, %v816
    %v819 = vtanh.pop %v818
    %v820 = vsub.f32 %v758, %v819
    %822 = vrot.lane.b32.xlu0 %v820, 96
    %v823 = vpop.permute.xlu0 %822
    %v825 = vmul.f32 %v807, %v823
    %827 = vrot.lane.b32.xlu0 %v825, 32
    %v828 = vpop.permute.xlu0 %827
    %v830 = vadd.f32 %v819, %v828
    %832 = vrot.lane.b32.xlu0 %v830, 64
    %v833 = vpop.permute.xlu0 %832
    %s835 = scalar_lea.vmem [#allocation3], 80
    %836 = vst.msk [vmem:[%s835] sm:$0xff] %vm43, %v833
    %v837 = vpack.c.bf16 %v830, %v830
    %839 = vrot.lane.b32.xlu0 %v837, 64
    %v840 = vpop.permute.xlu0 %839
    %v842 = vsel %vm43, %v840, 0
    %844 = vmatpush.bf16.msra.mxu0 0
    %845 = vmatpush.bf16.msra.mxu0 0
    %846 = vmatpush.bf16.msra.mxu0 0
    %847 = vmatpush.bf16.msra.mxu0 0
    %848 = vmatpush.bf16.msra.mxu0 0
    %849 = vmatpush.bf16.msra.mxu0 0
    %850 = vmatpush.bf16.msra.mxu0 %v40
    %851 = vmatpush.bf16.msra.mxu0 %v39
    %852 = vmatmul.bf16.gmra.mxu0 %v842
    %v853 = vpop.f32.mrf.mxu0
    %v854 = vadd.f32 0.0, %v853
    %v855 = vpop.f32.mrf.mxu0
    %856 = vdwg.mxu0
    %s857 = scalar_lea.vmem %s0, 44
    %v858 = vld [vmem:[%s857] sm:$0xf]
    %v859 = vunpack.c.l.bf16 %v858
    %v860 = vadd.f32 %v859, %v854
    %v861 = vxor.u32 %v860, 2147483648
    %v862 = vmul.f32 %v861, 1.442695
    %v863 = vpow.pop %v862
    %v864 = vadd.f32 %v863, 1.0
    %v865 = vrcp.pop %v864
    %v866 = vmul.f32 %v864, %v865
    %v867 = vsub.f32 1.0, %v866
    %v868 = vmul.f32 %v865, %v867
    %v869 = vadd.f32 %v865, %v868
    %vm870 = vweird.f32 %v864
    %vm871 = vweird.f32 %v865
    %vm872 = vmor %vm870, %vm871
    %v873 = vsel %vm872, %v865, %v869
    %v874 = vand.u32 2147483647, %v864
    %vm875 = vcmp.eq.f32.partialorder %v874, 8.507059e+37
    %v876 = vand.u32 %v864, 2147483648
    %v877 = vor.u32 1.1754944e-38, %v876
    %v878 = vsel %vm875, %v877, %v873
    %v879 = vmul.f32 1.0, %v878
    %v880 = vadd.f32 %v854, %v83
    %882 = vrot.lane.b32.xlu0 %v880, 64
    %v883 = vpop.permute.xlu0 %882
    %v885 = vmul.f32 %v879, %v883
    %887 = vrot.lane.b32.xlu0 %v885, 64
    %v888 = vpop.permute.xlu0 %887
    %v890 = vadd.f32 %v859, %v888
    %v891 = vtanh.pop %v890
    %v892 = vsub.f32 %v830, %v891
    %894 = vrot.lane.b32.xlu0 %v892, 96
    %v895 = vpop.permute.xlu0 %894
    %v897 = vmul.f32 %v879, %v895
    %899 = vrot.lane.b32.xlu0 %v897, 32
    %v900 = vpop.permute.xlu0 %899
    %v902 = vadd.f32 %v891, %v900
    %904 = vrot.lane.b32.xlu0 %v902, 64
    %v905 = vpop.permute.xlu0 %904
    %s907 = scalar_lea.vmem [#allocation3], 88
    %908 = vst.msk [vmem:[%s907] sm:$0xff] %vm43, %v905
    %v909 = vpack.c.bf16 %v902, %v902
    %911 = vrot.lane.b32.xlu0 %v909, 64
    %v912 = vpop.permute.xlu0 %911
    %v914 = vsel %vm43, %v912, 0
    %916 = vmatpush.bf16.msra.mxu0 0
    %917 = vmatpush.bf16.msra.mxu0 0
    %918 = vmatpush.bf16.msra.mxu0 0
    %919 = vmatpush.bf16.msra.mxu0 0
    %920 = vmatpush.bf16.msra.mxu0 0
    %921 = vmatpush.bf16.msra.mxu0 0
    %922 = vmatpush.bf16.msra.mxu0 %v40
    %923 = vmatpush.bf16.msra.mxu0 %v39
    %924 = vmatmul.bf16.gmra.mxu0 %v914
    %v925 = vpop.f32.mrf.mxu0
    %v926 = vadd.f32 0.0, %v925
    %v927 = vpop.f32.mrf.mxu0
    %928 = vdwg.mxu0
    %s929 = scalar_lea.vmem %s0, 48
    %v930 = vld [vmem:[%s929] sm:$0xf]
    %v931 = vunpack.c.l.bf16 %v930
    %v932 = vadd.f32 %v931, %v926
    %v933 = vxor.u32 %v932, 2147483648
    %v934 = vmul.f32 %v933, 1.442695
    %v935 = vpow.pop %v934
    %v936 = vadd.f32 %v935, 1.0
    %v937 = vrcp.pop %v936
    %v938 = vmul.f32 %v936, %v937
    %v939 = vsub.f32 1.0, %v938
    %v940 = vmul.f32 %v937, %v939
    %v941 = vadd.f32 %v937, %v940
    %vm942 = vweird.f32 %v936
    %vm943 = vweird.f32 %v937
    %vm944 = vmor %vm942, %vm943
    %v945 = vsel %vm944, %v937, %v941
    %v946 = vand.u32 2147483647, %v936
    %vm947 = vcmp.eq.f32.partialorder %v946, 8.507059e+37
    %v948 = vand.u32 %v936, 2147483648
    %v949 = vor.u32 1.1754944e-38, %v948
    %v950 = vsel %vm947, %v949, %v945
    %v951 = vmul.f32 1.0, %v950
    %v952 = vadd.f32 %v926, %v83
    %954 = vrot.lane.b32.xlu0 %v952, 64
    %v955 = vpop.permute.xlu0 %954
    %v957 = vmul.f32 %v951, %v955
    %959 = vrot.lane.b32.xlu0 %v957, 64
    %v960 = vpop.permute.xlu0 %959
    %v962 = vadd.f32 %v931, %v960
    %v963 = vtanh.pop %v962
    %v964 = vsub.f32 %v902, %v963
    %966 = vrot.lane.b32.xlu0 %v964, 96
    %v967 = vpop.permute.xlu0 %966
    %v969 = vmul.f32 %v951, %v967
    %971 = vrot.lane.b32.xlu0 %v969, 32
    %v972 = vpop.permute.xlu0 %971
    %v974 = vadd.f32 %v963, %v972
    %976 = vrot.lane.b32.xlu0 %v974, 64
    %v977 = vpop.permute.xlu0 %976
    %s979 = scalar_lea.vmem [#allocation3], 96
    %980 = vst.msk [vmem:[%s979] sm:$0xff] %vm43, %v977
    %v981 = vpack.c.bf16 %v974, %v974
    %983 = vrot.lane.b32.xlu0 %v981, 64
    %v984 = vpop.permute.xlu0 %983
    %v986 = vsel %vm43, %v984, 0
    %988 = vmatpush.bf16.msra.mxu0 0
    %989 = vmatpush.bf16.msra.mxu0 0
    %990 = vmatpush.bf16.msra.mxu0 0
    %991 = vmatpush.bf16.msra.mxu0 0
    %992 = vmatpush.bf16.msra.mxu0 0
    %993 = vmatpush.bf16.msra.mxu0 0
    %994 = vmatpush.bf16.msra.mxu0 %v40
    %995 = vmatpush.bf16.msra.mxu0 %v39
    %996 = vmatmul.bf16.gmra.mxu0 %v986
    %v997 = vpop.f32.mrf.mxu0
    %v998 = vadd.f32 0.0, %v997
    %v999 = vpop.f32.mrf.mxu0
    %1000 = vdwg.mxu0
    %s1001 = scalar_lea.vmem %s0, 52
    %v1002 = vld [vmem:[%s1001] sm:$0xf]
    %v1003 = vunpack.c.l.bf16 %v1002
    %v1004 = vadd.f32 %v1003, %v998
    %v1005 = vxor.u32 %v1004, 2147483648
    %v1006 = vmul.f32 %v1005, 1.442695
    %v1007 = vpow.pop %v1006
    %v1008 = vadd.f32 %v1007, 1.0
    %v1009 = vrcp.pop %v1008
    %v1010 = vmul.f32 %v1008, %v1009
    %v1011 = vsub.f32 1.0, %v1010
    %v1012 = vmul.f32 %v1009, %v1011
    %v1013 = vadd.f32 %v1009, %v1012
    %vm1014 = vweird.f32 %v1008
    %vm1015 = vweird.f32 %v1009
    %vm1016 = vmor %vm1014, %vm1015
    %v1017 = vsel %vm1016, %v1009, %v1013
    %v1018 = vand.u32 2147483647, %v1008
    %vm1019 = vcmp.eq.f32.partialorder %v1018, 8.507059e+37
    %v1020 = vand.u32 %v1008, 2147483648
    %v1021 = vor.u32 1.1754944e-38, %v1020
    %v1022 = vsel %vm1019, %v1021, %v1017
    %v1023 = vmul.f32 1.0, %v1022
    %v1024 = vadd.f32 %v998, %v83
    %1026 = vrot.lane.b32.xlu0 %v1024, 64
    %v1027 = vpop.permute.xlu0 %1026
    %v1029 = vmul.f32 %v1023, %v1027
    %1031 = vrot.lane.b32.xlu0 %v1029, 64
    %v1032 = vpop.permute.xlu0 %1031
    %v1034 = vadd.f32 %v1003, %v1032
    %v1035 = vtanh.pop %v1034
    %v1036 = vsub.f32 %v974, %v1035
    %1038 = vrot.lane.b32.xlu0 %v1036, 96
    %v1039 = vpop.permute.xlu0 %1038
    %v1041 = vmul.f32 %v1023, %v1039
    %1043 = vrot.lane.b32.xlu0 %v1041, 32
    %v1044 = vpop.permute.xlu0 %1043
    %v1046 = vadd.f32 %v1035, %v1044
    %1048 = vrot.lane.b32.xlu0 %v1046, 64
    %v1049 = vpop.permute.xlu0 %1048
    %s1051 = scalar_lea.vmem [#allocation3], 104
    %1052 = vst.msk [vmem:[%s1051] sm:$0xff] %vm43, %v1049
    %v1053 = vpack.c.bf16 %v1046, %v1046
    %1055 = vrot.lane.b32.xlu0 %v1053, 64
    %v1056 = vpop.permute.xlu0 %1055
    %v1058 = vsel %vm43, %v1056, 0
    %1060 = vmatpush.bf16.msra.mxu0 0
    %1061 = vmatpush.bf16.msra.mxu0 0
    %1062 = vmatpush.bf16.msra.mxu0 0
    %1063 = vmatpush.bf16.msra.mxu0 0
    %1064 = vmatpush.bf16.msra.mxu0 0
    %1065 = vmatpush.bf16.msra.mxu0 0
    %1066 = vmatpush.bf16.msra.mxu0 %v40
    %1067 = vmatpush.bf16.msra.mxu0 %v39
    %1068 = vmatmul.bf16.gmra.mxu0 %v1058
    %v1069 = vpop.f32.mrf.mxu0
    %v1070 = vadd.f32 0.0, %v1069
    %v1071 = vpop.f32.mrf.mxu0
    %1072 = vdwg.mxu0
    %s1073 = scalar_lea.vmem %s0, 56
    %v1074 = vld [vmem:[%s1073] sm:$0xf]
    %v1075 = vunpack.c.l.bf16 %v1074
    %v1076 = vadd.f32 %v1075, %v1070
    %v1077 = vxor.u32 %v1076, 2147483648
    %v1078 = vmul.f32 %v1077, 1.442695
    %v1079 = vpow.pop %v1078
    %v1080 = vadd.f32 %v1079, 1.0
    %v1081 = vrcp.pop %v1080
    %v1082 = vmul.f32 %v1080, %v1081
    %v1083 = vsub.f32 1.0, %v1082
    %v1084 = vmul.f32 %v1081, %v1083
    %v1085 = vadd.f32 %v1081, %v1084
    %vm1086 = vweird.f32 %v1080
    %vm1087 = vweird.f32 %v1081
    %vm1088 = vmor %vm1086, %vm1087
    %v1089 = vsel %vm1088, %v1081, %v1085
    %v1090 = vand.u32 2147483647, %v1080
    %vm1091 = vcmp.eq.f32.partialorder %v1090, 8.507059e+37
    %v1092 = vand.u32 %v1080, 2147483648
    %v1093 = vor.u32 1.1754944e-38, %v1092
    %v1094 = vsel %vm1091, %v1093, %v1089
    %v1095 = vmul.f32 1.0, %v1094
    %v1096 = vadd.f32 %v1070, %v83
    %1098 = vrot.lane.b32.xlu0 %v1096, 64
    %v1099 = vpop.permute.xlu0 %1098
    %v1101 = vmul.f32 %v1095, %v1099
    %1103 = vrot.lane.b32.xlu0 %v1101, 64
    %v1104 = vpop.permute.xlu0 %1103
    %v1106 = vadd.f32 %v1075, %v1104
    %v1107 = vtanh.pop %v1106
    %v1108 = vsub.f32 %v1046, %v1107
    %1110 = vrot.lane.b32.xlu0 %v1108, 96
    %v1111 = vpop.permute.xlu0 %1110
    %v1113 = vmul.f32 %v1095, %v1111
    %1115 = vrot.lane.b32.xlu0 %v1113, 32
    %v1116 = vpop.permute.xlu0 %1115
    %v1118 = vadd.f32 %v1107, %v1116
    %1120 = vrot.lane.b32.xlu0 %v1118, 64
    %v1121 = vpop.permute.xlu0 %1120
    %s1123 = scalar_lea.vmem [#allocation3], 112
    %1124 = vst.msk [vmem:[%s1123] sm:$0xff] %vm43, %v1121
    %v1125 = vpack.c.bf16 %v1118, %v1118
    %1127 = vrot.lane.b32.xlu0 %v1125, 64
    %v1128 = vpop.permute.xlu0 %1127
    %v1130 = vsel %vm43, %v1128, 0
    %1132 = vmatpush.bf16.msra.mxu0 0
    %1133 = vmatpush.bf16.msra.mxu0 0
    %1134 = vmatpush.bf16.msra.mxu0 0
    %1135 = vmatpush.bf16.msra.mxu0 0
    %1136 = vmatpush.bf16.msra.mxu0 0
    %1137 = vmatpush.bf16.msra.mxu0 0
    %1138 = vmatpush.bf16.msra.mxu0 %v40
    %1139 = vmatpush.bf16.msra.mxu0 %v39
    %1140 = vmatmul.bf16.gmra.mxu0 %v1130
    %v1141 = vpop.f32.mrf.mxu0
    %v1142 = vadd.f32 0.0, %v1141
    %v1143 = vpop.f32.mrf.mxu0
    %1144 = vdwg.mxu0
    %s1145 = scalar_lea.vmem %s0, 60
    %v1146 = vld [vmem:[%s1145] sm:$0xf]
    %v1147 = vunpack.c.l.bf16 %v1146
    %v1148 = vadd.f32 %v1147, %v1142
    %v1149 = vxor.u32 %v1148, 2147483648
    %v1150 = vmul.f32 %v1149, 1.442695
    %v1151 = vpow.pop %v1150
    %v1152 = vadd.f32 %v1151, 1.0
    %v1153 = vrcp.pop %v1152
    %v1154 = vmul.f32 %v1152, %v1153
    %v1155 = vsub.f32 1.0, %v1154
    %v1156 = vmul.f32 %v1153, %v1155
    %v1157 = vadd.f32 %v1153, %v1156
    %vm1158 = vweird.f32 %v1152
    %vm1159 = vweird.f32 %v1153
    %vm1160 = vmor %vm1158, %vm1159
    %v1161 = vsel %vm1160, %v1153, %v1157
    %v1162 = vand.u32 2147483647, %v1152
    %vm1163 = vcmp.eq.f32.partialorder %v1162, 8.507059e+37
    %v1164 = vand.u32 %v1152, 2147483648
    %v1165 = vor.u32 1.1754944e-38, %v1164
    %v1166 = vsel %vm1163, %v1165, %v1161
    %v1167 = vmul.f32 1.0, %v1166
    %v1168 = vadd.f32 %v1142, %v83
    %1170 = vrot.lane.b32.xlu0 %v1168, 64
    %v1171 = vpop.permute.xlu0 %1170
    %v1173 = vmul.f32 %v1167, %v1171
    %1175 = vrot.lane.b32.xlu0 %v1173, 64
    %v1176 = vpop.permute.xlu0 %1175
    %v1178 = vadd.f32 %v1147, %v1176
    %v1179 = vtanh.pop %v1178
    %v1180 = vsub.f32 %v1118, %v1179
    %1182 = vrot.lane.b32.xlu0 %v1180, 96
    %v1183 = vpop.permute.xlu0 %1182
    %v1185 = vmul.f32 %v1167, %v1183
    %1187 = vrot.lane.b32.xlu0 %v1185, 32
    %v1188 = vpop.permute.xlu0 %1187
    %v1190 = vadd.f32 %v1179, %v1188
    %1192 = vrot.lane.b32.xlu0 %v1190, 64
    %v1193 = vpop.permute.xlu0 %1192
    %s1195 = scalar_lea.vmem [#allocation3], 120
    %1196 = vst.msk [vmem:[%s1195] sm:$0xff] %vm43, %v1193
    %v1197 = vpack.c.bf16 %v1190, %v1190
    %1199 = vrot.lane.b32.xlu0 %v1197, 64
    %v1200 = vpop.permute.xlu0 %1199
    %v1202 = vsel %vm43, %v1200, 0
    %1204 = vmatpush.bf16.msra.mxu0 0
    %1205 = vmatpush.bf16.msra.mxu0 0
    %1206 = vmatpush.bf16.msra.mxu0 0
    %1207 = vmatpush.bf16.msra.mxu0 0
    %1208 = vmatpush.bf16.msra.mxu0 0
    %1209 = vmatpush.bf16.msra.mxu0 0
    %1210 = vmatpush.bf16.msra.mxu0 %v40
    %1211 = vmatpush.bf16.msra.mxu0 %v39
    %1212 = vmatmul.bf16.gmra.mxu0 %v1202
    %v1213 = vpop.f32.mrf.mxu0
    %v1214 = vadd.f32 0.0, %v1213
    %v1215 = vpop.f32.mrf.mxu0
    %1216 = vdwg.mxu0
    %s1217 = scalar_lea.vmem %s0, 64
    %v1218 = vld [vmem:[%s1217] sm:$0xf]
    %v1219 = vunpack.c.l.bf16 %v1218
    %v1220 = vadd.f32 %v1219, %v1214
    %v1221 = vxor.u32 %v1220, 2147483648
    %v1222 = vmul.f32 %v1221, 1.442695
    %v1223 = vpow.pop %v1222
    %v1224 = vadd.f32 %v1223, 1.0
    %v1225 = vrcp.pop %v1224
    %v1226 = vmul.f32 %v1224, %v1225
    %v1227 = vsub.f32 1.0, %v1226
    %v1228 = vmul.f32 %v1225, %v1227
    %v1229 = vadd.f32 %v1225, %v1228
    %vm1230 = vweird.f32 %v1224
    %vm1231 = vweird.f32 %v1225
    %vm1232 = vmor %vm1230, %vm1231
    %v1233 = vsel %vm1232, %v1225, %v1229
    %v1234 = vand.u32 2147483647, %v1224
    %vm1235 = vcmp.eq.f32.partialorder %v1234, 8.507059e+37
    %v1236 = vand.u32 %v1224, 2147483648
    %v1237 = vor.u32 1.1754944e-38, %v1236
    %v1238 = vsel %vm1235, %v1237, %v1233
    %v1239 = vmul.f32 1.0, %v1238
    %v1240 = vadd.f32 %v1214, %v83
    %1242 = vrot.lane.b32.xlu0 %v1240, 64
    %v1243 = vpop.permute.xlu0 %1242
    %v1245 = vmul.f32 %v1239, %v1243
    %1247 = vrot.lane.b32.xlu0 %v1245, 64
    %v1248 = vpop.permute.xlu0 %1247
    %v1250 = vadd.f32 %v1219, %v1248
    %v1251 = vtanh.pop %v1250
    %v1252 = vsub.f32 %v1190, %v1251
    %1254 = vrot.lane.b32.xlu0 %v1252, 96
    %v1255 = vpop.permute.xlu0 %1254
    %v1257 = vmul.f32 %v1239, %v1255
    %1259 = vrot.lane.b32.xlu0 %v1257, 32
    %v1260 = vpop.permute.xlu0 %1259
    %v1262 = vadd.f32 %v1251, %v1260
    %1264 = vrot.lane.b32.xlu0 %v1262, 64
    %v1265 = vpop.permute.xlu0 %1264
    %s1267 = scalar_lea.vmem [#allocation3], 128
    %1268 = vst.msk [vmem:[%s1267] sm:$0xff] %vm43, %v1265
    %v1269 = vpack.c.bf16 %v1262, %v1262
    %1271 = vrot.lane.b32.xlu0 %v1269, 64
    %v1272 = vpop.permute.xlu0 %1271
    %v1274 = vsel %vm43, %v1272, 0
    %1276 = vmatpush.bf16.msra.mxu0 0
    %1277 = vmatpush.bf16.msra.mxu0 0
    %1278 = vmatpush.bf16.msra.mxu0 0
    %1279 = vmatpush.bf16.msra.mxu0 0
    %1280 = vmatpush.bf16.msra.mxu0 0
    %1281 = vmatpush.bf16.msra.mxu0 0
    %1282 = vmatpush.bf16.msra.mxu0 %v40
    %1283 = vmatpush.bf16.msra.mxu0 %v39
    %1284 = vmatmul.bf16.gmra.mxu0 %v1274
    %v1285 = vpop.f32.mrf.mxu0
    %v1286 = vadd.f32 0.0, %v1285
    %v1287 = vpop.f32.mrf.mxu0
    %1288 = vdwg.mxu0
    %s1289 = scalar_lea.vmem %s0, 68
    %v1290 = vld [vmem:[%s1289] sm:$0xf]
    %v1291 = vunpack.c.l.bf16 %v1290
    %v1292 = vadd.f32 %v1291, %v1286
    %v1293 = vxor.u32 %v1292, 2147483648
    %v1294 = vmul.f32 %v1293, 1.442695
    %v1295 = vpow.pop %v1294
    %v1296 = vadd.f32 %v1295, 1.0
    %v1297 = vrcp.pop %v1296
    %v1298 = vmul.f32 %v1296, %v1297
    %v1299 = vsub.f32 1.0, %v1298
    %v1300 = vmul.f32 %v1297, %v1299
    %v1301 = vadd.f32 %v1297, %v1300
    %vm1302 = vweird.f32 %v1296
    %vm1303 = vweird.f32 %v1297
    %vm1304 = vmor %vm1302, %vm1303
    %v1305 = vsel %vm1304, %v1297, %v1301
    %v1306 = vand.u32 2147483647, %v1296
    %vm1307 = vcmp.eq.f32.partialorder %v1306, 8.507059e+37
    %v1308 = vand.u32 %v1296, 2147483648
    %v1309 = vor.u32 1.1754944e-38, %v1308
    %v1310 = vsel %vm1307, %v1309, %v1305
    %v1311 = vmul.f32 1.0, %v1310
    %v1312 = vadd.f32 %v1286, %v83
    %1314 = vrot.lane.b32.xlu0 %v1312, 64
    %v1315 = vpop.permute.xlu0 %1314
    %v1317 = vmul.f32 %v1311, %v1315
    %1319 = vrot.lane.b32.xlu0 %v1317, 64
    %v1320 = vpop.permute.xlu0 %1319
    %v1322 = vadd.f32 %v1291, %v1320
    %v1323 = vtanh.pop %v1322
    %v1324 = vsub.f32 %v1262, %v1323
    %1326 = vrot.lane.b32.xlu0 %v1324, 96
    %v1327 = vpop.permute.xlu0 %1326
    %v1329 = vmul.f32 %v1311, %v1327
    %1331 = vrot.lane.b32.xlu0 %v1329, 32
    %v1332 = vpop.permute.xlu0 %1331
    %v1334 = vadd.f32 %v1323, %v1332
    %1336 = vrot.lane.b32.xlu0 %v1334, 64
    %v1337 = vpop.permute.xlu0 %1336
    %s1339 = scalar_lea.vmem [#allocation3], 136
    %1340 = vst.msk [vmem:[%s1339] sm:$0xff] %vm43, %v1337
    %v1341 = vpack.c.bf16 %v1334, %v1334
    %1343 = vrot.lane.b32.xlu0 %v1341, 64
    %v1344 = vpop.permute.xlu0 %1343
    %v1346 = vsel %vm43, %v1344, 0
    %1348 = vmatpush.bf16.msra.mxu0 0
    %1349 = vmatpush.bf16.msra.mxu0 0
    %1350 = vmatpush.bf16.msra.mxu0 0
    %1351 = vmatpush.bf16.msra.mxu0 0
    %1352 = vmatpush.bf16.msra.mxu0 0
    %1353 = vmatpush.bf16.msra.mxu0 0
    %1354 = vmatpush.bf16.msra.mxu0 %v40
    %1355 = vmatpush.bf16.msra.mxu0 %v39
    %1356 = vmatmul.bf16.gmra.mxu0 %v1346
    %v1357 = vpop.f32.mrf.mxu0
    %v1358 = vadd.f32 0.0, %v1357
    %v1359 = vpop.f32.mrf.mxu0
    %1360 = vdwg.mxu0
    %s1361 = scalar_lea.vmem %s0, 72
    %v1362 = vld [vmem:[%s1361] sm:$0xf]
    %v1363 = vunpack.c.l.bf16 %v1362
    %v1364 = vadd.f32 %v1363, %v1358
    %v1365 = vxor.u32 %v1364, 2147483648
    %v1366 = vmul.f32 %v1365, 1.442695
    %v1367 = vpow.pop %v1366
    %v1368 = vadd.f32 %v1367, 1.0
    %v1369 = vrcp.pop %v1368
    %v1370 = vmul.f32 %v1368, %v1369
    %v1371 = vsub.f32 1.0, %v1370
    %v1372 = vmul.f32 %v1369, %v1371
    %v1373 = vadd.f32 %v1369, %v1372
    %vm1374 = vweird.f32 %v1368
    %vm1375 = vweird.f32 %v1369
    %vm1376 = vmor %vm1374, %vm1375
    %v1377 = vsel %vm1376, %v1369, %v1373
    %v1378 = vand.u32 2147483647, %v1368
    %vm1379 = vcmp.eq.f32.partialorder %v1378, 8.507059e+37
    %v1380 = vand.u32 %v1368, 2147483648
    %v1381 = vor.u32 1.1754944e-38, %v1380
    %v1382 = vsel %vm1379, %v1381, %v1377
    %v1383 = vmul.f32 1.0, %v1382
    %v1384 = vadd.f32 %v1358, %v83
    %1386 = vrot.lane.b32.xlu0 %v1384, 64
    %v1387 = vpop.permute.xlu0 %1386
    %v1389 = vmul.f32 %v1383, %v1387
    %1391 = vrot.lane.b32.xlu0 %v1389, 64
    %v1392 = vpop.permute.xlu0 %1391
    %v1394 = vadd.f32 %v1363, %v1392
    %v1395 = vtanh.pop %v1394
    %v1396 = vsub.f32 %v1334, %v1395
    %1398 = vrot.lane.b32.xlu0 %v1396, 96
    %v1399 = vpop.permute.xlu0 %1398
    %v1401 = vmul.f32 %v1383, %v1399
    %1403 = vrot.lane.b32.xlu0 %v1401, 32
    %v1404 = vpop.permute.xlu0 %1403
    %v1406 = vadd.f32 %v1395, %v1404
    %1408 = vrot.lane.b32.xlu0 %v1406, 64
    %v1409 = vpop.permute.xlu0 %1408
    %s1411 = scalar_lea.vmem [#allocation3], 144
    %1412 = vst.msk [vmem:[%s1411] sm:$0xff] %vm43, %v1409
    %v1413 = vpack.c.bf16 %v1406, %v1406
    %1415 = vrot.lane.b32.xlu0 %v1413, 64
    %v1416 = vpop.permute.xlu0 %1415
    %v1418 = vsel %vm43, %v1416, 0
    %1420 = vmatpush.bf16.msra.mxu0 0
    %1421 = vmatpush.bf16.msra.mxu0 0
    %1422 = vmatpush.bf16.msra.mxu0 0
    %1423 = vmatpush.bf16.msra.mxu0 0
    %1424 = vmatpush.bf16.msra.mxu0 0
    %1425 = vmatpush.bf16.msra.mxu0 0
    %1426 = vmatpush.bf16.msra.mxu0 %v40
    %1427 = vmatpush.bf16.msra.mxu0 %v39
    %1428 = vmatmul.bf16.gmra.mxu0 %v1418
    %v1429 = vpop.f32.mrf.mxu0
    %v1430 = vadd.f32 0.0, %v1429
    %v1431 = vpop.f32.mrf.mxu0
    %1432 = vdwg.mxu0
    %s1433 = scalar_lea.vmem %s0, 76
    %v1434 = vld [vmem:[%s1433] sm:$0xf]
    %v1435 = vunpack.c.l.bf16 %v1434
    %v1436 = vadd.f32 %v1435, %v1430
    %v1437 = vxor.u32 %v1436, 2147483648
    %v1438 = vmul.f32 %v1437, 1.442695
    %v1439 = vpow.pop %v1438
    %v1440 = vadd.f32 %v1439, 1.0
    %v1441 = vrcp.pop %v1440
    %v1442 = vmul.f32 %v1440, %v1441
    %v1443 = vsub.f32 1.0, %v1442
    %v1444 = vmul.f32 %v1441, %v1443
    %v1445 = vadd.f32 %v1441, %v1444
    %vm1446 = vweird.f32 %v1440
    %vm1447 = vweird.f32 %v1441
    %vm1448 = vmor %vm1446, %vm1447
    %v1449 = vsel %vm1448, %v1441, %v1445
    %v1450 = vand.u32 2147483647, %v1440
    %vm1451 = vcmp.eq.f32.partialorder %v1450, 8.507059e+37
    %v1452 = vand.u32 %v1440, 2147483648
    %v1453 = vor.u32 1.1754944e-38, %v1452
    %v1454 = vsel %vm1451, %v1453, %v1449
    %v1455 = vmul.f32 1.0, %v1454
    %v1456 = vadd.f32 %v1430, %v83
    %1458 = vrot.lane.b32.xlu0 %v1456, 64
    %v1459 = vpop.permute.xlu0 %1458
    %v1461 = vmul.f32 %v1455, %v1459
    %1463 = vrot.lane.b32.xlu0 %v1461, 64
    %v1464 = vpop.permute.xlu0 %1463
    %v1466 = vadd.f32 %v1435, %v1464
    %v1467 = vtanh.pop %v1466
    %v1468 = vsub.f32 %v1406, %v1467
    %1470 = vrot.lane.b32.xlu0 %v1468, 96
    %v1471 = vpop.permute.xlu0 %1470
    %v1473 = vmul.f32 %v1455, %v1471
    %1475 = vrot.lane.b32.xlu0 %v1473, 32
    %v1476 = vpop.permute.xlu0 %1475
    %v1478 = vadd.f32 %v1467, %v1476
    %1480 = vrot.lane.b32.xlu0 %v1478, 64
    %v1481 = vpop.permute.xlu0 %1480
    %s1483 = scalar_lea.vmem [#allocation3], 152
    %1484 = vst.msk [vmem:[%s1483] sm:$0xff] %vm43, %v1481
    %1485 = vst.msk [vmem:[#allocation2] sm:$0xff] %vm43, %v1481
    // Predicated region
    $region18: #{pisa_forward.1} parent=1 // pred_check
      _
    $region19: #{pisa_forward.1} parent=1 // pred_check_branch
      %1487 = sbr.rel (0) target = $region21
    $region20: #{pisa_forward.1} parent=1 // pred_region
      %1489 = vsyncadd [#allocation4], 0
      %s1490 = sshll.u32 [#allocation3], 4
      %s1491 = int_to_ptr.vmem [resolvable:$true] %s1490
      %s1492 = sshll.u32 %s3, 4
      %s1493 = int_to_ptr.hbm [resolvable:$true] %s1492
      %1498 = dma.vmem_to_hbm [thread:$0]  %s1491, 2560, %s1493, [#allocation4], 128, 128, 8
    $region21: #{pisa_forward.1} parent=1 // pred_fallthru
      _
    // Predicated region
    $region22: #{pisa_forward.1} parent=1 // pred_check
      _
    $region23: #{pisa_forward.1} parent=1 // pred_check_branch
      %1500 = sbr.rel (0) target = $region25
    $region24: #{pisa_forward.1} parent=1 // pred_region
      %1502 = dma.done [#allocation4], 2560
    $region25: #{pisa_forward.1} parent=1 // pred_fallthru
      _
    %1503 = vsyncpa [#allocation4], 1

</llo_original>
